<compile_context>
chip_gen: v7x
topology: tpu7x:2x2x1
jax: 0.10.0
libtpu: 0.0.40
codegen_flags: <defaults>
</compile_context>

<pallas_src>
import functools

import jax
import jax.numpy as jnp
import numpy as np
from jax import lax
from jax.experimental import pallas as pl
from jax.experimental.pallas import tpu as pltpu

_POOL_KS = (2, 3, 5)
_P_DTYPE = jnp.bfloat16   # set to jnp.float32 for a (near) bit-exact upsample


def _bilinear_matrix_np(out_size, in_size):
    """Row-stochastic 1-D interpolation matrix matching
    F.interpolate(mode='bilinear', align_corners=False)."""
    scale = in_size / out_size
    i = np.arange(out_size, dtype=np.float64)
    src = (i + 0.5) * scale - 0.5
    src = np.maximum(src, 0.0)                      # PyTorch clamps negatives to 0
    i0 = np.clip(np.floor(src).astype(np.int64), 0, in_size - 1)
    lam = src - i0
    i1 = np.minimum(i0 + 1, in_size - 1)
    A = np.zeros((out_size, in_size), dtype=np.float64)
    A[np.arange(out_size), i0] += 1.0 - lam
    A[np.arange(out_size), i1] += lam
    return A


def _fused_select_upsample_np(H, W, k):
    """P_k (HW, HW) = S_k @ K_k^T: picks the window-aligned pooled values and
    bilinearly upsamples them back to (H, W) in a single matrix.  Rows for
    non-window-aligned positions are exactly zero, so garbage maxima there
    (from the padded tail) are discarded."""
    hk, wk = H // k, W // k
    Ah = _bilinear_matrix_np(H, hk)                             # (H, hk)
    Aw = _bilinear_matrix_np(W, wk)                             # (W, wk)
    K = np.kron(Ah, Aw)                                         # (H*W, hk*wk)
    # Bias folding (out = t @ P + b) is exact only because K is row-stochastic.
    assert np.allclose(K.sum(axis=1), 1.0)
    src = (np.arange(hk)[:, None] * (k * W)
           + np.arange(wk)[None, :] * k).reshape(-1)            # flat window corners
    P = np.zeros((H * W, H * W), dtype=np.float64)
    P[src, :] = K.T                                             # == S @ K.T
    return P


def _blockdiag_P_np(H, W):
    HW = H * W
    P = np.zeros((3 * HW, 3 * HW), dtype=np.float64)
    for i, k in enumerate(_POOL_KS):
        P[i * HW:(i + 1) * HW, i * HW:(i + 1) * HW] = _fused_select_upsample_np(H, W, k)
    return P


def _spp_kernel(C, H, W, padl, x_ref, w_ref, b_ref, pbd_ref, out_ref, xpad_ref):
    HW = H * W
    kmax = max(_POOL_KS)
    L1 = HW + (kmax - 1) * W          # row-maxima length (column step shifts by <= (k-1)*W)
    nb = x_ref.shape[0]

    # Fold the right-pad into the kernel: zero-fill the scratch tail (any finite
    # value works -- padded positions only feed rows P zeroes out) and copy the
    # unpadded tile in.  Deliberately NOT gated on program_id == 0: with a
    # megacore-"parallel" grid, core 1 never sees step 0.
    xpad_ref[:, :, HW:] = jnp.zeros((nb, C, padl), dtype=xpad_ref.dtype)
    xpad_ref[:, :, 0:HW] = x_ref[...]

    # Separable max-pool, within-row maxima shared across kernel sizes.
    # rm_k[p] = max_{0 <= dj < k} x_flat[p + dj]
    rm2 = jnp.maximum(xpad_ref[:, :, 0:L1], xpad_ref[:, :, 1:1 + L1])
    rm3 = jnp.maximum(rm2, xpad_ref[:, :, 2:2 + L1])
    rm5 = jnp.maximum(jnp.maximum(rm3, xpad_ref[:, :, 3:3 + L1]),
                      xpad_ref[:, :, 4:4 + L1])

    def pool_and_reduce(rm, k):
        # Column maxima: m[p] = max_{0 <= di < k} rm[p + di*W], p in [0, HW).
        m = rm[:, :, 0:HW]
        for di in range(1, k):
            m = jnp.maximum(m, rm[:, :, di * W:di * W + HW])
        # 1x1-conv channel reduction on the VPU (tiny C; scalar weights in SMEM).
        t = w_ref[0] * m[:, 0, :]
        for c in range(1, C):
            t = t + w_ref[c] * m[:, c, :]
        return t                                                # (Nb, HW) f32

    t_cat = jnp.concatenate(
        [pool_and_reduce(rm2, 2), pool_and_reduce(rm3, 3), pool_and_reduce(rm5, 5)],
        axis=-1).astype(pbd_ref.dtype)                          # (Nb, 3*HW)

    # Window-select + bilinear upsample for all three branches as ONE matmul with
    # blockdiag(P2, P3, P5); conv bias added after the (row-stochastic) upsample.
    up = jnp.dot(t_cat, pbd_ref[...], preferred_element_type=jnp.float32)
    out_ref[:, 0, :] = (up + b_ref[0]).astype(out_ref.dtype)


def _pick_batch_tile(N):
    """Largest divisor of N that is <= 128 and leaves >= 2 grid steps when N >= 2,
    so the 'parallel' batch axis can feed both v7x TensorCores."""
    best = 1
    for nb in range(1, min(N, 128) + 1):
        if N % nb == 0 and (N // nb >= 2 or N == 1):
            best = nb
    return best


def spp_block(x, conv_w, conv_b):
    """Forward pass of SPPBlock.  x: (N, C, H, W) NCHW; conv_w: (C,); conv_b: (1,)."""
    N, C, H, W = x.shape
    assert H >= max(_POOL_KS) and W >= max(_POOL_KS), "SPPBlock needs H, W >= 5"
    HW = H * W
    kmax = max(_POOL_KS)
    padl = pl.cdiv((kmax - 1) * W + (kmax - 1), 128) * 128      # scratch lane pad
    Nb = _pick_batch_tile(N)
    # TODO(synk): for N == 1 on v7x add a second "parallel" axis (e.g. over
    # output-lane tiles) so both TensorCores get work; with N >= 2 the batch axis does.

    x = x.astype(jnp.float32)
    xf = x.reshape(N, C, HW)                       # lane-dense, unpadded (no extra HBM pass)

    p_bd = jnp.asarray(_blockdiag_P_np(H, W), dtype=_P_DTYPE)   # (3*HW, 3*HW) resident
    w = conv_w.reshape(C).astype(jnp.float32)      # SMEM scalar weights
    b = conv_b.reshape(1).astype(jnp.float32)      # SMEM scalar bias

    branches = pl.pallas_call(
        functools.partial(_spp_kernel, C, H, W, padl),
        out_shape=jax.ShapeDtypeStruct((N, 1, 3 * HW), jnp.float32),
        grid=(N // Nb,),
        in_specs=[
            pl.BlockSpec((Nb, C, HW), lambda n: (n, 0, 0)),
            pl.BlockSpec(memory_space=pltpu.MemorySpace.SMEM),
            pl.BlockSpec(memory_space=pltpu.MemorySpace.SMEM),
            pl.BlockSpec((3 * HW, 3 * HW), lambda n: (0, 0)),   # constant, stays resident
        ],
        out_specs=pl.BlockSpec((Nb, 1, 3 * HW), lambda n: (n, 0, 0)),
        scratch_shapes=[pltpu.VMEM((Nb, C, HW + padl), jnp.float32)],
        compiler_params=pltpu.CompilerParams(
            dimension_semantics=("parallel",),
            vmem_limit_bytes=32 * 1024 * 1024),
    )(xf, w, b, p_bd)

    # torch.cat([layer1, layer2, layer3, x], dim=1): the x passthrough stays at the
    # XLA level instead of being round-tripped through the kernel.
    return jnp.concatenate([branches.reshape(N, 3, H, W), x], axis=1)


def spp_block_ref(x, conv_w, conv_b):
    """Pure-JAX reference of the same math (correctness sanity check)."""
    N, C, H, W = x.shape
    layers = []
    for k in _POOL_KS:
        hk, wk = H // k, W // k
        p = lax.reduce_window(x, -jnp.inf, lax.max,
                              (1, 1, k, k), (1, 1, k, k), 'VALID')
        conv = jnp.einsum('nchw,c->nhw', p, conv_w) + conv_b[0]
        Ah = jnp.asarray(_bilinear_matrix_np(H, hk), jnp.float32)
        Aw = jnp.asarray(_bilinear_matrix_np(W, wk), jnp.float32)
        up = jnp.einsum('Hh,nhw,Ww->nHW', Ah, conv, Aw)
        layers.append(up[:, None])
    return jnp.concatenate(layers + [x], axis=1)


if __name__ == "__main__":
    key = jax.random.PRNGKey(0)
    kx, kw, kb = jax.random.split(key, 3)
    N, C, H, W = 4, 4, 16, 16                       # N=4 -> Nb=2, 2 parallel grid steps
    x = jax.random.normal(kx, (N, C, H, W), dtype=jnp.float32)
    # Conv2d(in_channels=C, out_channels=1, kernel_size=1) params, synthetic init.
    conv_w = 0.5 * jax.random.normal(kw, (C,), dtype=jnp.float32)
    conv_b = 0.1 * jax.random.normal(kb, (1,), dtype=jnp.float32)

    out = jax.block_until_ready(spp_block(x, conv_w, conv_b))
    ref = spp_block_ref(x, conv_w, conv_b)

    assert out.shape == (N, 3 + C, H, W)
    # Tolerance sized for the bf16 P / bf16 LHS matmul (~2^-8 relative on the
    # branch channels); set _P_DTYPE = jnp.float32 for a near-exact match.
    np.testing.assert_allclose(np.asarray(out), np.asarray(ref), rtol=2e-2, atol=2e-2)
    np.testing.assert_array_equal(np.asarray(out[:, 3:]), np.asarray(x))  # passthrough exact
    print("KERNEL_OK")
</pallas_src>

<mosaic_0001>
module attributes {stable_mosaic.version = 11 : i64} {
  func.func @_spp_kernel(%arg0: i32, %arg1: memref<2x4x256xf32, #tpu.memory_space<vmem>>, %arg2: memref<4xf32, #tpu.memory_space<smem>>, %arg3: memref<1xf32, #tpu.memory_space<smem>>, %arg4: memref<768x768xbf16, #tpu.memory_space<vmem>>, %arg5: memref<2x1x768xf32, #tpu.memory_space<vmem>>, %arg6: memref<2x4x384xf32, #tpu.memory_space<vmem>>) attributes {dimension_semantics = [#tpu.dimension_semantics<parallel>], iteration_bounds = array<i64: 2>, scalar_prefetch = 0 : i64, scratch_operands = 1 : i64, tpu.core_type = #tpu.core_type<tc>, window_params = [{transform_indices = @transform_0, window_bounds = array<i64: 2, 4, 256>}, {transform_indices = @transform_1, window_bounds = array<i64: 4>}, {transform_indices = @transform_2, window_bounds = array<i64: 1>}, {pipeline_mode = #tpu.pipeline_mode<synchronous>, transform_indices = @transform_3, window_bounds = array<i64: 768, 768>}, {transform_indices = @transform_4, window_bounds = array<i64: 2, 1, 768>}]} {
    %cst = arith.constant 0.000000e+00 : f32
    %0 = vector.broadcast %cst : f32 to vector<2x4x128xf32>
    %c0 = arith.constant 0 : index
    %c0_0 = arith.constant 0 : index
    %c256 = arith.constant 256 : index
    %1 = vector.load %arg6[%c0, %c0_0, %c256] : memref<2x4x384xf32, #tpu.memory_space<vmem>>, vector<2x4x128xf32>
    tpu.vector_store %arg6[%c0, %c0_0, %c256], %0 {strides = array<i32>} : memref<2x4x384xf32, #tpu.memory_space<vmem>>, vector<2x4x128xf32>,
    %c0_1 = arith.constant 0 : index
    %c0_2 = arith.constant 0 : index
    %c0_3 = arith.constant 0 : index
    %2 = vector.load %arg1[%c0_1, %c0_2, %c0_3] : memref<2x4x256xf32, #tpu.memory_space<vmem>>, vector<2x4x256xf32>
    %c0_4 = arith.constant 0 : index
    %c0_5 = arith.constant 0 : index
    %c0_6 = arith.constant 0 : index
    %3 = vector.load %arg6[%c0_4, %c0_5, %c0_6] : memref<2x4x384xf32, #tpu.memory_space<vmem>>, vector<2x4x256xf32>
    tpu.vector_store %arg6[%c0_4, %c0_5, %c0_6], %2 {strides = array<i32>} : memref<2x4x384xf32, #tpu.memory_space<vmem>>, vector<2x4x256xf32>,
    %c0_7 = arith.constant 0 : index
    %c0_8 = arith.constant 0 : index
    %c0_9 = arith.constant 0 : index
    %4 = vector.load %arg6[%c0_7, %c0_8, %c0_9] : memref<2x4x384xf32, #tpu.memory_space<vmem>>, vector<2x4x320xf32>
    %c0_10 = arith.constant 0 : index
    %c0_11 = arith.constant 0 : index
    %c1 = arith.constant 1 : index
    %5 = vector.load %arg6[%c0_10, %c0_11, %c1] : memref<2x4x384xf32, #tpu.memory_space<vmem>>, vector<2x4x320xf32>
    %6 = arith.maximumf %4, %5 : vector<2x4x320xf32>
    %c0_12 = arith.constant 0 : index
    %c0_13 = arith.constant 0 : index
    %c2 = arith.constant 2 : index
    %7 = vector.load %arg6[%c0_12, %c0_13, %c2] : memref<2x4x384xf32, #tpu.memory_space<vmem>>, vector<2x4x320xf32>
    %8 = arith.maximumf %6, %7 : vector<2x4x320xf32>
    %c0_14 = arith.constant 0 : index
    %c0_15 = arith.constant 0 : index
    %c3 = arith.constant 3 : index
    %9 = vector.load %arg6[%c0_14, %c0_15, %c3] : memref<2x4x384xf32, #tpu.memory_space<vmem>>, vector<2x4x320xf32>
    %10 = arith.maximumf %8, %9 : vector<2x4x320xf32>
    %c0_16 = arith.constant 0 : index
    %c0_17 = arith.constant 0 : index
    %c4 = arith.constant 4 : index
    %11 = vector.load %arg6[%c0_16, %c0_17, %c4] : memref<2x4x384xf32, #tpu.memory_space<vmem>>, vector<2x4x320xf32>
    %12 = arith.maximumf %10, %11 : vector<2x4x320xf32>
    %13 = vector.extract_strided_slice %6 {offsets = [0, 0, 0], sizes = [2, 4, 256], strides = [1, 1, 1]} : vector<2x4x320xf32> to vector<2x4x256xf32>
    %14 = vector.extract_strided_slice %6 {offsets = [0, 0, 16], sizes = [2, 4, 256], strides = [1, 1, 1]} : vector<2x4x320xf32> to vector<2x4x256xf32>
    %15 = arith.maximumf %13, %14 : vector<2x4x256xf32>
    %c0_18 = arith.constant 0 : index
    %16 = memref.load %arg2[%c0_18] : memref<4xf32, #tpu.memory_space<smem>>
    %17 = vector.extract_strided_slice %15 {offsets = [0, 0, 0], sizes = [2, 1, 256], strides = [1, 1, 1]} : vector<2x4x256xf32> to vector<2x1x256xf32>
    %18 = vector.shape_cast %17 : vector<2x1x256xf32> to vector<2x256xf32>
    %19 = vector.broadcast %16 : f32 to vector<2x256xf32>
    %20 = arith.mulf %19, %18 : vector<2x256xf32>
    %c1_19 = arith.constant 1 : index
    %21 = memref.load %arg2[%c1_19] : memref<4xf32, #tpu.memory_space<smem>>
    %22 = vector.extract_strided_slice %15 {offsets = [0, 1, 0], sizes = [2, 1, 256], strides = [1, 1, 1]} : vector<2x4x256xf32> to vector<2x1x256xf32>
    %23 = vector.shape_cast %22 : vector<2x1x256xf32> to vector<2x256xf32>
    %24 = vector.broadcast %21 : f32 to vector<2x256xf32>
    %25 = arith.mulf %24, %23 : vector<2x256xf32>
    %26 = arith.addf %20, %25 : vector<2x256xf32>
    %c2_20 = arith.constant 2 : index
    %27 = memref.load %arg2[%c2_20] : memref<4xf32, #tpu.memory_space<smem>>
    %28 = vector.extract_strided_slice %15 {offsets = [0, 2, 0], sizes = [2, 1, 256], strides = [1, 1, 1]} : vector<2x4x256xf32> to vector<2x1x256xf32>
    %29 = vector.shape_cast %28 : vector<2x1x256xf32> to vector<2x256xf32>
    %30 = vector.broadcast %27 : f32 to vector<2x256xf32>
    %31 = arith.mulf %30, %29 : vector<2x256xf32>
    %32 = arith.addf %26, %31 : vector<2x256xf32>
    %c3_21 = arith.constant 3 : index
    %33 = memref.load %arg2[%c3_21] : memref<4xf32, #tpu.memory_space<smem>>
    %34 = vector.extract_strided_slice %15 {offsets = [0, 3, 0], sizes = [2, 1, 256], strides = [1, 1, 1]} : vector<2x4x256xf32> to vector<2x1x256xf32>
    %35 = vector.shape_cast %34 : vector<2x1x256xf32> to vector<2x256xf32>
    %36 = vector.broadcast %33 : f32 to vector<2x256xf32>
    %37 = arith.mulf %36, %35 : vector<2x256xf32>
    %38 = arith.addf %32, %37 : vector<2x256xf32>
    %39 = vector.extract_strided_slice %8 {offsets = [0, 0, 0], sizes = [2, 4, 256], strides = [1, 1, 1]} : vector<2x4x320xf32> to vector<2x4x256xf32>
    %40 = vector.extract_strided_slice %8 {offsets = [0, 0, 16], sizes = [2, 4, 256], strides = [1, 1, 1]} : vector<2x4x320xf32> to vector<2x4x256xf32>
    %41 = arith.maximumf %39, %40 : vector<2x4x256xf32>
    %42 = vector.extract_strided_slice %8 {offsets = [0, 0, 32], sizes = [2, 4, 256], strides = [1, 1, 1]} : vector<2x4x320xf32> to vector<2x4x256xf32>
    %43 = arith.maximumf %41, %42 : vector<2x4x256xf32>
    %c0_22 = arith.constant 0 : index
    %44 = memref.load %arg2[%c0_22] : memref<4xf32, #tpu.memory_space<smem>>
    %45 = vector.extract_strided_slice %43 {offsets = [0, 0, 0], sizes = [2, 1, 256], strides = [1, 1, 1]} : vector<2x4x256xf32> to vector<2x1x256xf32>
    %46 = vector.shape_cast %45 : vector<2x1x256xf32> to vector<2x256xf32>
    %47 = vector.broadcast %44 : f32 to vector<2x256xf32>
    %48 = arith.mulf %47, %46 : vector<2x256xf32>
    %c1_23 = arith.constant 1 : index
    %49 = memref.load %arg2[%c1_23] : memref<4xf32, #tpu.memory_space<smem>>
    %50 = vector.extract_strided_slice %43 {offsets = [0, 1, 0], sizes = [2, 1, 256], strides = [1, 1, 1]} : vector<2x4x256xf32> to vector<2x1x256xf32>
    %51 = vector.shape_cast %50 : vector<2x1x256xf32> to vector<2x256xf32>
    %52 = vector.broadcast %49 : f32 to vector<2x256xf32>
    %53 = arith.mulf %52, %51 : vector<2x256xf32>
    %54 = arith.addf %48, %53 : vector<2x256xf32>
    %c2_24 = arith.constant 2 : index
    %55 = memref.load %arg2[%c2_24] : memref<4xf32, #tpu.memory_space<smem>>
    %56 = vector.extract_strided_slice %43 {offsets = [0, 2, 0], sizes = [2, 1, 256], strides = [1, 1, 1]} : vector<2x4x256xf32> to vector<2x1x256xf32>
    %57 = vector.shape_cast %56 : vector<2x1x256xf32> to vector<2x256xf32>
    %58 = vector.broadcast %55 : f32 to vector<2x256xf32>
    %59 = arith.mulf %58, %57 : vector<2x256xf32>
    %60 = arith.addf %54, %59 : vector<2x256xf32>
    %c3_25 = arith.constant 3 : index
    %61 = memref.load %arg2[%c3_25] : memref<4xf32, #tpu.memory_space<smem>>
    %62 = vector.extract_strided_slice %43 {offsets = [0, 3, 0], sizes = [2, 1, 256], strides = [1, 1, 1]} : vector<2x4x256xf32> to vector<2x1x256xf32>
    %63 = vector.shape_cast %62 : vector<2x1x256xf32> to vector<2x256xf32>
    %64 = vector.broadcast %61 : f32 to vector<2x256xf32>
    %65 = arith.mulf %64, %63 : vector<2x256xf32>
    %66 = arith.addf %60, %65 : vector<2x256xf32>
    %67 = vector.extract_strided_slice %12 {offsets = [0, 0, 0], sizes = [2, 4, 256], strides = [1, 1, 1]} : vector<2x4x320xf32> to vector<2x4x256xf32>
    %68 = vector.extract_strided_slice %12 {offsets = [0, 0, 16], sizes = [2, 4, 256], strides = [1, 1, 1]} : vector<2x4x320xf32> to vector<2x4x256xf32>
    %69 = arith.maximumf %67, %68 : vector<2x4x256xf32>
    %70 = vector.extract_strided_slice %12 {offsets = [0, 0, 32], sizes = [2, 4, 256], strides = [1, 1, 1]} : vector<2x4x320xf32> to vector<2x4x256xf32>
    %71 = arith.maximumf %69, %70 : vector<2x4x256xf32>
    %72 = vector.extract_strided_slice %12 {offsets = [0, 0, 48], sizes = [2, 4, 256], strides = [1, 1, 1]} : vector<2x4x320xf32> to vector<2x4x256xf32>
    %73 = arith.maximumf %71, %72 : vector<2x4x256xf32>
    %74 = vector.extract_strided_slice %12 {offsets = [0, 0, 64], sizes = [2, 4, 256], strides = [1, 1, 1]} : vector<2x4x320xf32> to vector<2x4x256xf32>
    %75 = arith.maximumf %73, %74 : vector<2x4x256xf32>
    %c0_26 = arith.constant 0 : index
    %76 = memref.load %arg2[%c0_26] : memref<4xf32, #tpu.memory_space<smem>>
    %77 = vector.extract_strided_slice %75 {offsets = [0, 0, 0], sizes = [2, 1, 256], strides = [1, 1, 1]} : vector<2x4x256xf32> to vector<2x1x256xf32>
    %78 = vector.shape_cast %77 : vector<2x1x256xf32> to vector<2x256xf32>
    %79 = vector.broadcast %76 : f32 to vector<2x256xf32>
    %80 = arith.mulf %79, %78 : vector<2x256xf32>
    %c1_27 = arith.constant 1 : index
    %81 = memref.load %arg2[%c1_27] : memref<4xf32, #tpu.memory_space<smem>>
    %82 = vector.extract_strided_slice %75 {offsets = [0, 1, 0], sizes = [2, 1, 256], strides = [1, 1, 1]} : vector<2x4x256xf32> to vector<2x1x256xf32>
    %83 = vector.shape_cast %82 : vector<2x1x256xf32> to vector<2x256xf32>
    %84 = vector.broadcast %81 : f32 to vector<2x256xf32>
    %85 = arith.mulf %84, %83 : vector<2x256xf32>
    %86 = arith.addf %80, %85 : vector<2x256xf32>
    %c2_28 = arith.constant 2 : index
    %87 = memref.load %arg2[%c2_28] : memref<4xf32, #tpu.memory_space<smem>>
    %88 = vector.extract_strided_slice %75 {offsets = [0, 2, 0], sizes = [2, 1, 256], strides = [1, 1, 1]} : vector<2x4x256xf32> to vector<2x1x256xf32>
    %89 = vector.shape_cast %88 : vector<2x1x256xf32> to vector<2x256xf32>
    %90 = vector.broadcast %87 : f32 to vector<2x256xf32>
    %91 = arith.mulf %90, %89 : vector<2x256xf32>
    %92 = arith.addf %86, %91 : vector<2x256xf32>
    %c3_29 = arith.constant 3 : index
    %93 = memref.load %arg2[%c3_29] : memref<4xf32, #tpu.memory_space<smem>>
    %94 = vector.extract_strided_slice %75 {offsets = [0, 3, 0], sizes = [2, 1, 256], strides = [1, 1, 1]} : vector<2x4x256xf32> to vector<2x1x256xf32>
    %95 = vector.shape_cast %94 : vector<2x1x256xf32> to vector<2x256xf32>
    %96 = vector.broadcast %93 : f32 to vector<2x256xf32>
    %97 = arith.mulf %96, %95 : vector<2x256xf32>
    %98 = arith.addf %92, %97 : vector<2x256xf32>
    %99 = tpu.concatenate %38, %66, %98 in 1 : vector<2x256xf32>, vector<2x256xf32>, vector<2x256xf32> -> vector<2x768xf32>
    %100 = arith.truncf %99 : vector<2x768xf32> to vector<2x768xbf16>
    %c0_30 = arith.constant 0 : index
    %c0_31 = arith.constant 0 : index
    %101 = vector.load %arg4[%c0_30, %c0_31] : memref<768x768xbf16, #tpu.memory_space<vmem>>, vector<768x768xbf16>
    %cst_32 = arith.constant dense<0.000000e+00> : vector<2x768xf32>
    %102 = tpu.matmul %100, %101, %cst_32 {dimension_numbers = #tpu.dot_dimension_numbers<[1], [0], [0], [1], [0, 0, 1, 1], [], []>} : vector<2x768xbf16>, vector<768x768xbf16>, vector<2x768xf32> -> vector<2x768xf32>
    %c0_33 = arith.constant 0 : index
    %103 = memref.load %arg3[%c0_33] : memref<1xf32, #tpu.memory_space<smem>>
    %104 = vector.broadcast %103 : f32 to vector<2x768xf32>
    %105 = arith.addf %102, %104 : vector<2x768xf32>
    %c0_34 = arith.constant 0 : index
    %c0_35 = arith.constant 0 : index
    %c0_36 = arith.constant 0 : index
    %106 = vector.load %arg5[%c0_34, %c0_35, %c0_36] : memref<2x1x768xf32, #tpu.memory_space<vmem>>, vector<2x1x768xf32>
    %107 = vector.shape_cast %106 : vector<2x1x768xf32> to vector<2x768xf32>
    %108 = vector.shape_cast %105 : vector<2x768xf32> to vector<2x1x768xf32>
    tpu.vector_store %arg5[%c0_34, %c0_35, %c0_36], %108 {strides = array<i32>} : memref<2x1x768xf32, #tpu.memory_space<vmem>>, vector<2x1x768xf32>,
    return
  }
  func.func @transform_0(%arg0: i32) -> (i32, i32, i32) {
    %c0_i32 = arith.constant 0 : i32
    %c0_i32_0 = arith.constant 0 : i32
    %c0_i32_1 = arith.constant 0 : i32
    return %arg0, %c0_i32, %c0_i32_0 : i32, i32, i32
  }
  func.func @transform_1(%arg0: i32) -> i32 {
    %c0_i32 = arith.constant 0 : i32
    %c0_i32_0 = arith.constant 0 : i32
    return %c0_i32 : i32
  }
  func.func @transform_2(%arg0: i32) -> i32 {
    %c0_i32 = arith.constant 0 : i32
    %c0_i32_0 = arith.constant 0 : i32
    return %c0_i32 : i32
  }
  func.func @transform_3(%arg0: i32) -> (i32, i32) {
    %c0_i32 = arith.constant 0 : i32
    %c0_i32_0 = arith.constant 0 : i32
    %c0_i32_1 = arith.constant 0 : i32
    return %c0_i32, %c0_i32_0 : i32, i32
  }
  func.func @transform_4(%arg0: i32) -> (i32, i32, i32) {
    %c0_i32 = arith.constant 0 : i32
    %c0_i32_0 = arith.constant 0 : i32
    %c0_i32_1 = arith.constant 0 : i32
    return %arg0, %c0_i32, %c0_i32_0 : i32, i32, i32
  }
}

</mosaic_0001>

<llo_original>
// kernel: tpu_custom_call.1
$region0: #{tpu_custom_call.1}
  #allocation0 [shape = 'u32[]', space=smem, size = 0x4, offset = 0x4, fixed_abs, tag = 'smem constant byte address 0x4 - core index']
  #allocation1 [shape = 'u32[144,128]{1,0:T(1,128)}', space=vmem, size = 0x12000, scoped, tag = 'internal scratch']
  #allocation2 [shape = 'f32[2,4,384]{2,1,0:T(4,128)}', space=vmem, size = 0x3000, scoped, tag = 'scratch operand']
  #allocation3 [shape = 'f32[1]{0:T(128)S(6)}', space=smem, size = 0x200, scoped, tag = 'scoped memory for tpu_custom_call.1']
  %s0 = inlined_call_operand.hbm [shape: f32[4,4,256], index: 0, kind: input, shape index: {}]
  %s1 = inlined_call_operand.hbm [shape: f32[4], index: 1, kind: input, shape index: {}]
  %s2 = inlined_call_operand.<no memory space> [shape: f32[1], index: 2, kind: input, shape index: {}]
  %s3 = inlined_call_operand.hbm [shape: bf16[768,768], index: 3, kind: input, shape index: {}]
  %s4 = inlined_call_operand.hbm [shape: f32[4,1,768], index: 4, kind: output, shape index: {}]
  %s5 = sld [smem:[#allocation0]]
  $region61: #{tpu_custom_call.1} parent=0
    _
  %s7 = ssub.s32 1, %s5
  %s8 = scalar_select 0, %s7, %s5
  %9 = sst [smem:[#allocation3]] %s2
  $region1: #{tpu_custom_call.1} parent=0
    #allocation4 [shape = 'u8[16384]{0}', space=vmem, size = 0x4000, scoped, tag = 'input window, operand 0']
    #allocation5 [shape = 's32[2]{0}', space=sflag, size = 0x8, scoped, tag = 'scoped memory for tpu_custom_call.1']
    #allocation6 [shape = 's32[2]{0}', space=sflag, size = 0x8, scoped, tag = 'scoped memory for tpu_custom_call.1']
    #allocation7 [shape = 's32[2]{0}', space=sflag, size = 0x8, scoped, tag = 'scoped memory for tpu_custom_call.1']
    #allocation8 [shape = 'u8[512]{0}', space=smem, size = 0x200, scoped, tag = 'input window, operand 1, single buffered']
    #allocation9 [shape = 'u8[1179648]{0}', space=vmem, size = 0x120000, scoped, tag = 'input window, operand 3, single buffered']
    #allocation10 [shape = 's32[1]{0}', space=sflag, size = 0x4, scoped, tag = 'scoped memory for tpu_custom_call.1']
    #allocation11 [shape = 'u8[12288]{0}', space=vmem, size = 0x3000, scoped, tag = 'output window, operand 0']
    %10 = vsyncpa [#allocation5], 0
    %s11 = scalar_lea.sflag [#allocation5], 1
    %12 = vsyncpa %s11, 0
    %13 = vsyncpa [#allocation7], 0
    %14 = vsyncpa [#allocation10], 0
    %15 = vsyncpa [#allocation6], 0
    %s16 = scalar_lea.sflag [#allocation6], 1
    %17 = vsyncpa %s16, 0
    loop: start=0, step=1, limit=4
    $region2: #{tpu_custom_call.1} parent=1 // loop_pre_header
      _
    $region3: #{tpu_custom_call.1} parent=1 // loop_header
      %s19 = sphi 0, %s23
      %p20 = scmp.ge.s32.totalorder %s19, 4
      %s29 = sphi 0, %s31
      %s32 = sphi 0, %s29
      %s33 = sphi 0, %s32
      %s49 = sphi 0, %s33
      %s53 = sphi 0, %s53
      %s55 = sphi 0, %s53
      %s56 = sphi 0, %s55
      %s70 = sphi 0, %s56
      %s74 = sphi 0, %s74
      %s76 = sphi 0, %s74
      %s77 = sphi 0, %s76
      %s91 = sphi 0, %s77
      %s95 = sphi 0, %s95
      %s97 = sphi 0, %s95
      %s98 = sphi 0, %s97
      %s112 = sphi 0, %s98
      %s118 = sphi 0, %s120
      %s121 = sphi 0, %s118
      %s122 = sphi 0, %s121
      %s138 = sphi 0, %s122
    $region4: #{tpu_custom_call.1} parent=1 // loop_header_branch
      %22 = sbr.rel (%p20) target = $region8
    $region5: #{tpu_custom_call.1} parent=1 // loop_body
      %s24 = ssub.s32 %s19, 1
      %s25 = ssub.s32 %s19, 2
      %s26 = sadd.s32 %s19, 1
      %s27 = ssub.s32 %s19, %s26
      %p28 = scmp.eq.s32.totalorder %s27, 0
      %s30 = sadd.s32 %s29, 1
      %s31 = scalar_select %p28, %s29, %s30
      %p34 = pneg %p28
      %p35 = scmp.eq.s32.totalorder %s19, 1
      %p36 = por %p34, %p35
      %p37 = scmp.ne.s32.totalorder %s29, %s32
      %p38 = scmp.eq.s32.totalorder %s19, 0
      %p39 = por %p37, %p38
      %p40 = scmp.ne.s32.totalorder %s29, %s32
      %p41 = scmp.eq.s32.totalorder %s24, 1
      %p42 = por %p40, %p41
      %p43 = scmp.ne.s32.totalorder %s32, %s33
      %p44 = scmp.eq.s32.totalorder %s24, 0
      %p45 = por %p43, %p44
      %p46 = scmp.ne.s32.totalorder %s32, %s33
      %p47 = scmp.eq.s32.totalorder %s25, 1
      %p48 = por %p46, %p47
      %p50 = scmp.ne.s32.totalorder %s33, %s49
      %p51 = scmp.eq.s32.totalorder %s25, 0
      %p52 = por %p50, %p51
      %s54 = sadd.s32 %s53, 1
      %p57 = scmp.eq.s32.totalorder %s19, 1
      %p58 = scmp.ne.s32.totalorder %s53, %s55
      %p59 = scmp.eq.s32.totalorder %s19, 0
      %p60 = por %p58, %p59
      %p61 = scmp.ne.s32.totalorder %s53, %s55
      %p62 = scmp.eq.s32.totalorder %s24, 1
      %p63 = por %p61, %p62
      %p64 = scmp.ne.s32.totalorder %s55, %s56
      %p65 = scmp.eq.s32.totalorder %s24, 0
      %p66 = por %p64, %p65
      %p67 = scmp.ne.s32.totalorder %s55, %s56
      %p68 = scmp.eq.s32.totalorder %s25, 1
      %p69 = por %p67, %p68
      %p71 = scmp.ne.s32.totalorder %s56, %s70
      %p72 = scmp.eq.s32.totalorder %s25, 0
      %p73 = por %p71, %p72
      %s75 = sadd.s32 %s74, 1
      %p78 = scmp.eq.s32.totalorder %s19, 1
      %p79 = scmp.ne.s32.totalorder %s74, %s76
      %p80 = scmp.eq.s32.totalorder %s19, 0
      %p81 = por %p79, %p80
      %p82 = scmp.ne.s32.totalorder %s74, %s76
      %p83 = scmp.eq.s32.totalorder %s24, 1
      %p84 = por %p82, %p83
      %p85 = scmp.ne.s32.totalorder %s76, %s77
      %p86 = scmp.eq.s32.totalorder %s24, 0
      %p87 = por %p85, %p86
      %p88 = scmp.ne.s32.totalorder %s76, %s77
      %p89 = scmp.eq.s32.totalorder %s25, 1
      %p90 = por %p88, %p89
      %p92 = scmp.ne.s32.totalorder %s77, %s91
      %p93 = scmp.eq.s32.totalorder %s25, 0
      %p94 = por %p92, %p93
      %s96 = sadd.s32 %s95, 1
      %p99 = scmp.eq.s32.totalorder %s19, 1
      %p100 = scmp.ne.s32.totalorder %s95, %s97
      %p101 = scmp.eq.s32.totalorder %s19, 0
      %p102 = por %p100, %p101
      %p103 = scmp.ne.s32.totalorder %s95, %s97
      %p104 = scmp.eq.s32.totalorder %s24, 1
      %p105 = por %p103, %p104
      %p106 = scmp.ne.s32.totalorder %s97, %s98
      %p107 = scmp.eq.s32.totalorder %s24, 0
      %p108 = por %p106, %p107
      %p109 = scmp.ne.s32.totalorder %s97, %s98
      %p110 = scmp.eq.s32.totalorder %s25, 1
      %p111 = por %p109, %p110
      %p113 = scmp.ne.s32.totalorder %s98, %s112
      %p114 = scmp.eq.s32.totalorder %s25, 0
      %p115 = por %p113, %p114
      %s116 = ssub.s32 %s19, %s26
      %p117 = scmp.eq.s32.totalorder %s116, 0
      %s119 = sadd.s32 %s118, 1
      %s120 = scalar_select %p117, %s118, %s119
      %p123 = pneg %p117
      %p124 = scmp.eq.s32.totalorder %s19, 1
      %p125 = por %p123, %p124
      %p126 = scmp.ne.s32.totalorder %s118, %s121
      %p127 = scmp.eq.s32.totalorder %s19, 0
      %p128 = por %p126, %p127
      %p129 = scmp.ne.s32.totalorder %s118, %s121
      %p130 = scmp.eq.s32.totalorder %s24, 1
      %p131 = por %p129, %p130
      %p132 = scmp.ne.s32.totalorder %s121, %s122
      %p133 = scmp.eq.s32.totalorder %s24, 0
      %p134 = por %p132, %p133
      %p135 = scmp.ne.s32.totalorder %s121, %s122
      %p136 = scmp.eq.s32.totalorder %s25, 1
      %p137 = por %p135, %p136
      %p139 = scmp.ne.s32.totalorder %s122, %s138
      %p140 = scmp.eq.s32.totalorder %s25, 0
      %p141 = por %p139, %p140
      %p142 = scmp.le.s32.totalorder 1, %s19
      %p143 = scmp.lt.s32.totalorder %s19, 3
      %p144 = pnand %p142, %p143
      %p145 = pneg %p144
      // Predicated region
      $region9: #{tpu_custom_call.1} parent=5 // pred_check
        _
      $region10: #{tpu_custom_call.1} parent=5 // pred_check_branch
        %147 = sbr.rel (%p144) target = $region12
      $region11: #{tpu_custom_call.1} parent=5 // pred_region
        %s148 = ssub.s32 %s19, 1
        // Predicated region
        $region13: #{tpu_custom_call.1} parent=11 // pred_check
          %p149 = pneg %p66
        $region14: #{tpu_custom_call.1} parent=11 // pred_check_branch
          %151 = sbr.rel (%p149) target = $region16
        $region15: #{tpu_custom_call.1} parent=11 // pred_region
          %s153 = ssub.s32 16, 16
          %154 = vsyncadd [#allocation7], %s153
          %157 = dma.hbm_to_smem %s1, 16, [#allocation8], [#allocation7]
        $region16: #{tpu_custom_call.1} parent=11 // pred_fallthru
          _
        // Predicated region
        $region17: #{tpu_custom_call.1} parent=11 // pred_check
          %p158 = pneg %p87
        $region18: #{tpu_custom_call.1} parent=11 // pred_check_branch
          %160 = sbr.rel (%p158) target = $region20
        $region19: #{tpu_custom_call.1} parent=11 // pred_region
          _
        $region20: #{tpu_custom_call.1} parent=11 // pred_fallthru
          _
        // Predicated region
        $region21: #{tpu_custom_call.1} parent=11 // pred_check
          %p161 = pneg %p108
        $region22: #{tpu_custom_call.1} parent=11 // pred_check_branch
          %163 = sbr.rel (%p161) target = $region24
        $region23: #{tpu_custom_call.1} parent=11 // pred_region
          %s165 = ssub.s32 36864, 36864
          %166 = vsyncadd [#allocation10], %s165
          %s167 = sshll.u32 [#allocation9], 4
          %s168 = int_to_ptr.vmem [resolvable:$true] %s167
          %173 = dma.hbm_to_vmem [thread:$0]  %s3, 36864, %s168, [#allocation10], 384, 384, 24
        $region24: #{tpu_custom_call.1} parent=11 // pred_fallthru
          _
      $region12: #{tpu_custom_call.1} parent=5 // pred_fallthru
        _
      %p174 = scmp.lt.s32.totalorder %s19, 2
      // Predicated region
      $region25: #{tpu_custom_call.1} parent=5 // pred_check
        %p175 = pneg %p174
      $region26: #{tpu_custom_call.1} parent=5 // pred_check_branch
        %177 = sbr.rel (%p175) target = $region28
      $region27: #{tpu_custom_call.1} parent=5 // pred_region
        // Predicated region
        $region29: #{tpu_custom_call.1} parent=27 // pred_check
          %p178 = pneg %p39
        $region30: #{tpu_custom_call.1} parent=27 // pred_check_branch
          %180 = sbr.rel (%p178) target = $region32
        $region31: #{tpu_custom_call.1} parent=27 // pred_region
          %s181 = sand.u32 %s29, 1
          %s182 = scalar_lea.sflag [#allocation5], %s181
          %s183 = sand.u32 %s29, 1
          %s184 = smul.addr %s183, 16
          %s185 = scalar_lea.vmem [#allocation4], %s184
          %s186 = smul.u32 2, %s19
          %s188 = ssub.s32 256, 256
          %189 = vsyncadd %s182, %s188
          %s190 = smul.addr %s186, 2
          %s191 = smul.addr %s190, 64
          %s192 = scalar_lea.hbm %s0, %s191
          %s193 = sshll.u32 %s185, 4
          %s194 = int_to_ptr.vmem [resolvable:$true] %s193
          %199 = dma.hbm_to_vmem [thread:$0]  %s192, 256, %s194, %s182, 128, 128, 8
        $region32: #{tpu_custom_call.1} parent=27 // pred_fallthru
          _
      $region28: #{tpu_custom_call.1} parent=5 // pred_fallthru
        _
      %p200 = scmp.le.s32.totalorder 1, %s19
      %p201 = scmp.lt.s32.totalorder %s19, 3
      %p202 = pnand %p200, %p201
      %p203 = pneg %p202
      // Predicated region
      $region33: #{tpu_custom_call.1} parent=5 // pred_check
        _
      $region34: #{tpu_custom_call.1} parent=5 // pred_check_branch
        %205 = sbr.rel (%p202) target = $region36
      $region35: #{tpu_custom_call.1} parent=5 // pred_region
        %s206 = ssub.s32 %s19, 1
        %s207 = sand.u32 %s32, 1
        %s208 = scalar_lea.sflag [#allocation5], %s207
        %s209 = sand.u32 %s32, 1
        %s210 = smul.addr %s209, 16
        %s211 = scalar_lea.vmem [#allocation4], %s210
        // Predicated region
        $region37: #{tpu_custom_call.1} parent=35 // pred_check
          %p212 = pneg %p45
        $region38: #{tpu_custom_call.1} parent=35 // pred_check_branch
          %214 = sbr.rel (%p212) target = $region40
        $region39: #{tpu_custom_call.1} parent=35 // pred_region
          %215 = dma.done %s208, 256
        $region40: #{tpu_custom_call.1} parent=35 // pred_fallthru
          _
        // Predicated region
        $region41: #{tpu_custom_call.1} parent=35 // pred_check
          %p216 = pneg %p66
        $region42: #{tpu_custom_call.1} parent=35 // pred_check_branch
          %218 = sbr.rel (%p216) target = $region44
        $region43: #{tpu_custom_call.1} parent=35 // pred_region
          %219 = dma.done [#allocation7], 16
        $region44: #{tpu_custom_call.1} parent=35 // pred_fallthru
          _
        // Predicated region
        $region45: #{tpu_custom_call.1} parent=35 // pred_check
          %p220 = pneg %p108
        $region46: #{tpu_custom_call.1} parent=35 // pred_check_branch
          %222 = sbr.rel (%p220) target = $region48
        $region47: #{tpu_custom_call.1} parent=35 // pred_region
          %223 = dma.done [#allocation10], 36864
        $region48: #{tpu_custom_call.1} parent=35 // pred_fallthru
          _
        %224 = sfence
        %s225 = sand.u32 %s32, 1
        %s226 = scalar_lea.sflag [#allocation5], %s225
        %s227 = sand.u32 %s32, 1
        %s228 = smul.addr %s227, 16
        %s229 = scalar_lea.vmem [#allocation4], %s228
        %p230 = pneg %p45
        %p231 = pneg %p42
        %p232 = pneg %p66
        %p233 = pneg %p63
        %p234 = pneg %p87
        %p235 = pneg %p84
        %p236 = pneg %p108
        %p237 = pneg %p105
        %p238 = pneg %p134
        %p239 = pneg %p131
        %s240 = sand.u32 %s121, 1
        %s241 = scalar_lea.sflag [#allocation6], %s240
        %s242 = sand.u32 %s121, 1
        %s243 = smul.addr %s242, 12
        %s244 = scalar_lea.vmem [#allocation11], %s243
        %s245 = smul.u32 2, %s24
        %s246 = smul.u32 2, %s24
        %247 = vst [vmem:[#allocation2 + $0x8] sm:$0xf] 0.0
        %248 = vst [vmem:[#allocation2 + $0x14] sm:$0xf] 0.0
        %v249 = vld [vmem:[%s211] sm:$0xff]
        %v250 = vld [vmem:[%s211 + $0x8] sm:$0xff]
        %251 = vst [vmem:[#allocation2] sm:$0xff] %v249
        %252 = vst [vmem:[#allocation2 + $0xc] sm:$0xff] %v250
        %v253 = vld [vmem:[#allocation2] sm:$0xff]
        %v254 = vld [vmem:[#allocation2 + $0x8] sm:$0xf]
        %v255 = vld [vmem:[#allocation2 + $0xc] sm:$0xff]
        %v256 = vld [vmem:[#allocation2 + $0x14] sm:$0xf]
        %261 = vrot.lane.b32.xlu0 %v253, 127
        %v262 = vpop.permute.xlu0 %261
        %263 = vrot.lane.b32.xlu0 %v254, 127
        %v264 = vpop.permute.xlu0 %263
        %265 = vrot.lane.b32.xlu0 %v255, 127
        %v266 = vpop.permute.xlu0 %265
        %267 = vrot.lane.b32.xlu0 %v256, 127
        %v268 = vpop.permute.xlu0 %267
        %v269 = vrot.slane %v262, 4
        %v270 = vrot.slane %v264, 4
        %v271 = vrot.slane %v266, 4
        %v272 = vrot.slane %v268, 4
        %vm273 = vcmask 1043456
        %v274 = vsel %vm273, %v269, %v270
        %vm275 = vcmask 1039360
        %v276 = vsel %vm275, %v262, %v274
        %v277 = vsel %vm273, %v271, %v272
        %v278 = vsel %vm275, %v266, %v277
        %v283 = vmax.f32 %v253, %v276
        %v284 = vmax.f32 %v254, %v264
        %v285 = vmax.f32 %v255, %v278
        %v286 = vmax.f32 %v256, %v268
        %287 = vrot.lane.b32.xlu0 %v253, 126
        %v288 = vpop.permute.xlu0 %287
        %289 = vrot.lane.b32.xlu0 %v254, 126
        %v290 = vpop.permute.xlu0 %289
        %291 = vrot.lane.b32.xlu0 %v255, 126
        %v292 = vpop.permute.xlu0 %291
        %293 = vrot.lane.b32.xlu0 %v256, 126
        %v294 = vpop.permute.xlu0 %293
        %v295 = vrot.slane %v288, 4
        %v296 = vrot.slane %v290, 4
        %v297 = vrot.slane %v292, 4
        %v298 = vrot.slane %v294, 4
        %v299 = vsel %vm273, %v295, %v296
        %vm300 = vcmask 1031168
        %v301 = vsel %vm300, %v288, %v299
        %v302 = vsel %vm273, %v297, %v298
        %v303 = vsel %vm300, %v292, %v302
        %v308 = vmax.f32 %v283, %v301
        %v309 = vmax.f32 %v284, %v290
        %v310 = vmax.f32 %v285, %v303
        %v311 = vmax.f32 %v286, %v294
        %312 = vrot.lane.b32.xlu0 %v253, 125
        %v313 = vpop.permute.xlu0 %312
        %314 = vrot.lane.b32.xlu0 %v254, 125
        %v315 = vpop.permute.xlu0 %314
        %316 = vrot.lane.b32.xlu0 %v255, 125
        %v317 = vpop.permute.xlu0 %316
        %318 = vrot.lane.b32.xlu0 %v256, 125
        %v319 = vpop.permute.xlu0 %318
        %v320 = vrot.slane %v313, 4
        %v321 = vrot.slane %v315, 4
        %v322 = vrot.slane %v317, 4
        %v323 = vrot.slane %v319, 4
        %v324 = vsel %vm273, %v320, %v321
        %vm325 = vcmask 1022976
        %v326 = vsel %vm325, %v313, %v324
        %v327 = vsel %vm273, %v322, %v323
        %v328 = vsel %vm325, %v317, %v327
        %v333 = vmax.f32 %v308, %v326
        %v334 = vmax.f32 %v309, %v315
        %v335 = vmax.f32 %v310, %v328
        %v336 = vmax.f32 %v311, %v319
        %337 = vrot.lane.b32.xlu0 %v253, 124
        %v338 = vpop.permute.xlu0 %337
        %339 = vrot.lane.b32.xlu0 %v254, 124
        %v340 = vpop.permute.xlu0 %339
        %341 = vrot.lane.b32.xlu0 %v255, 124
        %v342 = vpop.permute.xlu0 %341
        %343 = vrot.lane.b32.xlu0 %v256, 124
        %v344 = vpop.permute.xlu0 %343
        %v345 = vrot.slane %v338, 4
        %v346 = vrot.slane %v340, 4
        %v347 = vrot.slane %v342, 4
        %v348 = vrot.slane %v344, 4
        %v349 = vsel %vm273, %v345, %v346
        %vm350 = vcmask 1014784
        %v351 = vsel %vm350, %v338, %v349
        %v352 = vsel %vm273, %v347, %v348
        %v353 = vsel %vm350, %v342, %v352
        %v358 = vmax.f32 %v333, %v351
        %v359 = vmax.f32 %v334, %v340
        %v360 = vmax.f32 %v335, %v353
        %v361 = vmax.f32 %v336, %v344
        %366 = vrot.lane.b32.xlu0 %v283, 112
        %v367 = vpop.permute.xlu0 %366
        %368 = vrot.lane.b32.xlu0 %v284, 112
        %v369 = vpop.permute.xlu0 %368
        %370 = vrot.lane.b32.xlu0 %v285, 112
        %v371 = vpop.permute.xlu0 %370
        %372 = vrot.lane.b32.xlu0 %v286, 112
        %v373 = vpop.permute.xlu0 %372
        %v374 = vrot.slane %v367, 4
        %v375 = vrot.slane %v369, 4
        %v376 = vrot.slane %v371, 4
        %v377 = vrot.slane %v373, 4
        %v378 = vsel %vm273, %v374, %v375
        %vm379 = vcmask 916480
        %v380 = vsel %vm379, %v367, %v378
        %v381 = vsel %vm273, %v376, %v377
        %v382 = vsel %vm379, %v371, %v381
        %v385 = vmax.f32 %v283, %v380
        %v386 = vmax.f32 %v285, %v382
        %s387 = sld [smem:[#allocation8]]
        %v388 = vstv %s387
        %v389 = vmul.f32 %v388, %v385
        %v390 = vmul.f32 %v388, %v386
        %s391 = sld [smem:[#allocation8 + $0x1]]
        %v392 = vstv %s391
        %v393 = vmul.f32 %v392, %v385
        %v394 = vmul.f32 %v392, %v386
        %v397 = vrot.slane %v393, 5
        %v398 = vrot.slane %v397, 4
        %v399 = vrot.slane %v394, 5
        %v400 = vrot.slane %v399, 4
        %v403 = vadd.f32 %v389, %v398
        %v404 = vadd.f32 %v390, %v400
        %s405 = sld [smem:[#allocation8 + $0x2]]
        %v406 = vstv %s405
        %v407 = vmul.f32 %v406, %v385
        %v408 = vmul.f32 %v406, %v386
        %v411 = vrot.slane %v407, 6
        %v412 = vrot.slane %v411, 4
        %v413 = vrot.slane %v408, 6
        %v414 = vrot.slane %v413, 4
        %v417 = vadd.f32 %v403, %v412
        %v418 = vadd.f32 %v404, %v414
        %s419 = sld [smem:[#allocation8 + $0x3]]
        %v420 = vstv %s419
        %v421 = vmul.f32 %v420, %v385
        %v422 = vmul.f32 %v420, %v386
        %v425 = vrot.slane %v421, 7
        %v426 = vrot.slane %v425, 4
        %v427 = vrot.slane %v422, 7
        %v428 = vrot.slane %v427, 4
        %v431 = vadd.f32 %v417, %v426
        %v432 = vadd.f32 %v418, %v428
        %437 = vrot.lane.b32.xlu0 %v308, 112
        %v438 = vpop.permute.xlu0 %437
        %439 = vrot.lane.b32.xlu0 %v309, 112
        %v440 = vpop.permute.xlu0 %439
        %441 = vrot.lane.b32.xlu0 %v310, 112
        %v442 = vpop.permute.xlu0 %441
        %443 = vrot.lane.b32.xlu0 %v311, 112
        %v444 = vpop.permute.xlu0 %443
        %v445 = vrot.slane %v438, 4
        %v446 = vrot.slane %v440, 4
        %v447 = vrot.slane %v442, 4
        %v448 = vrot.slane %v444, 4
        %v449 = vsel %vm273, %v445, %v446
        %v450 = vsel %vm379, %v438, %v449
        %v451 = vsel %vm273, %v447, %v448
        %v452 = vsel %vm379, %v442, %v451
        %v455 = vmax.f32 %v308, %v450
        %v456 = vmax.f32 %v310, %v452
        %457 = vrot.lane.b32.xlu0 %v308, 96
        %v458 = vpop.permute.xlu0 %457
        %459 = vrot.lane.b32.xlu0 %v309, 96
        %v460 = vpop.permute.xlu0 %459
        %461 = vrot.lane.b32.xlu0 %v310, 96
        %v462 = vpop.permute.xlu0 %461
        %463 = vrot.lane.b32.xlu0 %v311, 96
        %v464 = vpop.permute.xlu0 %463
        %v465 = vrot.slane %v458, 4
        %v466 = vrot.slane %v460, 4
        %v467 = vrot.slane %v462, 4
        %v468 = vrot.slane %v464, 4
        %v469 = vsel %vm273, %v465, %v466
        %vm470 = vcmask 785408
        %v471 = vsel %vm470, %v458, %v469
        %v472 = vsel %vm273, %v467, %v468
        %v473 = vsel %vm470, %v462, %v472
        %v476 = vmax.f32 %v455, %v471
        %v477 = vmax.f32 %v456, %v473
        %v478 = vmul.f32 %v388, %v476
        %v479 = vmul.f32 %v388, %v477
        %v480 = vmul.f32 %v392, %v476
        %v481 = vmul.f32 %v392, %v477
        %v484 = vrot.slane %v480, 5
        %v485 = vrot.slane %v484, 4
        %v486 = vrot.slane %v481, 5
        %v487 = vrot.slane %v486, 4
        %v490 = vadd.f32 %v478, %v485
        %v491 = vadd.f32 %v479, %v487
        %v492 = vmul.f32 %v406, %v476
        %v493 = vmul.f32 %v406, %v477
        %v496 = vrot.slane %v492, 6
        %v497 = vrot.slane %v496, 4
        %v498 = vrot.slane %v493, 6
        %v499 = vrot.slane %v498, 4
        %v502 = vadd.f32 %v490, %v497
        %v503 = vadd.f32 %v491, %v499
        %v504 = vmul.f32 %v420, %v476
        %v505 = vmul.f32 %v420, %v477
        %v508 = vrot.slane %v504, 7
        %v509 = vrot.slane %v508, 4
        %v510 = vrot.slane %v505, 7
        %v511 = vrot.slane %v510, 4
        %v514 = vadd.f32 %v502, %v509
        %v515 = vadd.f32 %v503, %v511
        %520 = vrot.lane.b32.xlu0 %v358, 112
        %v521 = vpop.permute.xlu0 %520
        %522 = vrot.lane.b32.xlu0 %v359, 112
        %v523 = vpop.permute.xlu0 %522
        %524 = vrot.lane.b32.xlu0 %v360, 112
        %v525 = vpop.permute.xlu0 %524
        %526 = vrot.lane.b32.xlu0 %v361, 112
        %v527 = vpop.permute.xlu0 %526
        %v528 = vrot.slane %v521, 4
        %v529 = vrot.slane %v523, 4
        %v530 = vrot.slane %v525, 4
        %v531 = vrot.slane %v527, 4
        %v532 = vsel %vm273, %v528, %v529
        %v533 = vsel %vm379, %v521, %v532
        %v534 = vsel %vm273, %v530, %v531
        %v535 = vsel %vm379, %v525, %v534
        %v538 = vmax.f32 %v358, %v533
        %v539 = vmax.f32 %v360, %v535
        %540 = vrot.lane.b32.xlu0 %v358, 96
        %v541 = vpop.permute.xlu0 %540
        %542 = vrot.lane.b32.xlu0 %v359, 96
        %v543 = vpop.permute.xlu0 %542
        %544 = vrot.lane.b32.xlu0 %v360, 96
        %v545 = vpop.permute.xlu0 %544
        %546 = vrot.lane.b32.xlu0 %v361, 96
        %v547 = vpop.permute.xlu0 %546
        %v548 = vrot.slane %v541, 4
        %v549 = vrot.slane %v543, 4
        %v550 = vrot.slane %v545, 4
        %v551 = vrot.slane %v547, 4
        %v552 = vsel %vm273, %v548, %v549
        %v553 = vsel %vm470, %v541, %v552
        %v554 = vsel %vm273, %v550, %v551
        %v555 = vsel %vm470, %v545, %v554
        %v558 = vmax.f32 %v538, %v553
        %v559 = vmax.f32 %v539, %v555
        %560 = vrot.lane.b32.xlu0 %v358, 80
        %v561 = vpop.permute.xlu0 %560
        %562 = vrot.lane.b32.xlu0 %v359, 80
        %v563 = vpop.permute.xlu0 %562
        %564 = vrot.lane.b32.xlu0 %v360, 80
        %v565 = vpop.permute.xlu0 %564
        %566 = vrot.lane.b32.xlu0 %v361, 80
        %v567 = vpop.permute.xlu0 %566
        %v568 = vrot.slane %v561, 4
        %v569 = vrot.slane %v563, 4
        %v570 = vrot.slane %v565, 4
        %v571 = vrot.slane %v567, 4
        %v572 = vsel %vm273, %v568, %v569
        %vm573 = vcmask 654336
        %v574 = vsel %vm573, %v561, %v572
        %v575 = vsel %vm273, %v570, %v571
        %v576 = vsel %vm573, %v565, %v575
        %v579 = vmax.f32 %v558, %v574
        %v580 = vmax.f32 %v559, %v576
        %581 = vrot.lane.b32.xlu0 %v358, 64
        %v582 = vpop.permute.xlu0 %581
        %583 = vrot.lane.b32.xlu0 %v359, 64
        %v584 = vpop.permute.xlu0 %583
        %585 = vrot.lane.b32.xlu0 %v360, 64
        %v586 = vpop.permute.xlu0 %585
        %587 = vrot.lane.b32.xlu0 %v361, 64
        %v588 = vpop.permute.xlu0 %587
        %v589 = vrot.slane %v582, 4
        %v590 = vrot.slane %v584, 4
        %v591 = vrot.slane %v586, 4
        %v592 = vrot.slane %v588, 4
        %v593 = vsel %vm273, %v589, %v590
        %vm594 = vcmask 523264
        %v595 = vsel %vm594, %v582, %v593
        %v596 = vsel %vm273, %v591, %v592
        %v597 = vsel %vm594, %v586, %v596
        %v600 = vmax.f32 %v579, %v595
        %v601 = vmax.f32 %v580, %v597
        %v602 = vmul.f32 %v388, %v600
        %v603 = vmul.f32 %v388, %v601
        %v604 = vmul.f32 %v392, %v600
        %v605 = vmul.f32 %v392, %v601
        %v608 = vrot.slane %v604, 5
        %v609 = vrot.slane %v608, 4
        %v610 = vrot.slane %v605, 5
        %v611 = vrot.slane %v610, 4
        %v614 = vadd.f32 %v602, %v609
        %v615 = vadd.f32 %v603, %v611
        %v616 = vmul.f32 %v406, %v600
        %v617 = vmul.f32 %v406, %v601
        %v620 = vrot.slane %v616, 6
        %v621 = vrot.slane %v620, 4
        %v622 = vrot.slane %v617, 6
        %v623 = vrot.slane %v622, 4
        %v626 = vadd.f32 %v614, %v621
        %v627 = vadd.f32 %v615, %v623
        %v628 = vmul.f32 %v420, %v600
        %v629 = vmul.f32 %v420, %v601
        %v632 = vrot.slane %v628, 7
        %v633 = vrot.slane %v632, 4
        %v634 = vrot.slane %v629, 7
        %v635 = vrot.slane %v634, 4
        %v638 = vadd.f32 %v626, %v633
        %v639 = vadd.f32 %v627, %v635
        %v642 = vlaneseq
        %v643 = vshrl.u32 %v642, 7
        %v644 = vsub.s32 0, %v643
        %v645 = vrot.slane %v431, %v644
        %v646 = vlaneseq
        %v647 = vshrl.u32 %v646, 7
        %v648 = vsub.s32 4, %v647
        %v649 = vrot.slane %v431, %v648
        %v650 = vlaneseq
        %v651 = vshrl.u32 %v650, 7
        %v652 = vsub.s32 0, %v651
        %v653 = vrot.slane %v432, %v652
        %v654 = vlaneseq
        %v655 = vshrl.u32 %v654, 7
        %v656 = vsub.s32 4, %v655
        %v657 = vrot.slane %v432, %v656
        %vm658 = vcmask 1041409
        %v659 = vsel %vm658, %v653, %v645
        %v660 = vsel %vm658, %v657, %v649
        %v665 = vlaneseq
        %v666 = vshrl.u32 %v665, 7
        %v667 = vsub.s32 0, %v666
        %v668 = vrot.slane %v514, %v667
        %v669 = vlaneseq
        %v670 = vshrl.u32 %v669, 7
        %v671 = vsub.s32 4, %v670
        %v672 = vrot.slane %v514, %v671
        %v673 = vlaneseq
        %v674 = vshrl.u32 %v673, 7
        %v675 = vsub.s32 0, %v674
        %v676 = vrot.slane %v515, %v675
        %v677 = vlaneseq
        %v678 = vshrl.u32 %v677, 7
        %v679 = vsub.s32 4, %v678
        %v680 = vrot.slane %v515, %v679
        %v681 = vsel %vm658, %v676, %v668
        %v682 = vsel %vm658, %v680, %v672
        %v687 = vlaneseq
        %v688 = vshrl.u32 %v687, 7
        %v689 = vsub.s32 0, %v688
        %v690 = vrot.slane %v638, %v689
        %v691 = vlaneseq
        %v692 = vshrl.u32 %v691, 7
        %v693 = vsub.s32 4, %v692
        %v694 = vrot.slane %v638, %v693
        %v695 = vlaneseq
        %v696 = vshrl.u32 %v695, 7
        %v697 = vsub.s32 0, %v696
        %v698 = vrot.slane %v639, %v697
        %v699 = vlaneseq
        %v700 = vshrl.u32 %v699, 7
        %v701 = vsub.s32 4, %v700
        %v702 = vrot.slane %v639, %v701
        %v703 = vsel %vm658, %v698, %v690
        %v704 = vsel %vm658, %v702, %v694
        %v707 = vpack.c.bf16 %v659, %v659
        %v708 = vpack.c.bf16 %v660, %v660
        %v709 = vpack.c.bf16 %v681, %v681
        %v710 = vpack.c.bf16 %v682, %v682
        %v711 = vpack.c.bf16 %v703, %v703
        %v712 = vpack.c.bf16 %v704, %v704
        %v713 = vld [vmem:[#allocation9] sm:$0xff]
        %v714 = vld [vmem:[#allocation9 + $0x8] sm:$0xff]
        %v715 = vld [vmem:[#allocation9 + $0x10] sm:$0xff]
        %v716 = vld [vmem:[#allocation9 + $0x18] sm:$0xff]
        %v717 = vld [vmem:[#allocation9 + $0x20] sm:$0xff]
        %v718 = vld [vmem:[#allocation9 + $0x28] sm:$0xff]
        %v719 = vld [vmem:[#allocation9 + $0x30] sm:$0xff]
        %v720 = vld [vmem:[#allocation9 + $0x38] sm:$0xff]
        %v721 = vld [vmem:[#allocation9 + $0x40] sm:$0xff]
        %v722 = vld [vmem:[#allocation9 + $0x48] sm:$0xff]
        %v723 = vld [vmem:[#allocation9 + $0x50] sm:$0xff]
        %v724 = vld [vmem:[#allocation9 + $0x58] sm:$0xff]
        %v725 = vld [vmem:[#allocation9 + $0x60] sm:$0xff]
        %v726 = vld [vmem:[#allocation9 + $0x68] sm:$0xff]
        %v727 = vld [vmem:[#allocation9 + $0x70] sm:$0xff]
        %v728 = vld [vmem:[#allocation9 + $0x78] sm:$0xff]
        %v729 = vld [vmem:[#allocation9 + $0x80] sm:$0xff]
        %v730 = vld [vmem:[#allocation9 + $0x88] sm:$0xff]
        %v731 = vld [vmem:[#allocation9 + $0x90] sm:$0xff]
        %v732 = vld [vmem:[#allocation9 + $0x98] sm:$0xff]
        %v733 = vld [vmem:[#allocation9 + $0xa0] sm:$0xff]
        %v734 = vld [vmem:[#allocation9 + $0xa8] sm:$0xff]
        %v735 = vld [vmem:[#allocation9 + $0xb0] sm:$0xff]
        %v736 = vld [vmem:[#allocation9 + $0xb8] sm:$0xff]
        %v737 = vld [vmem:[#allocation9 + $0xc0] sm:$0xff]
        %v738 = vld [vmem:[#allocation9 + $0xc8] sm:$0xff]
        %v739 = vld [vmem:[#allocation9 + $0xd0] sm:$0xff]
        %v740 = vld [vmem:[#allocation9 + $0xd8] sm:$0xff]
        %v741 = vld [vmem:[#allocation9 + $0xe0] sm:$0xff]
        %v742 = vld [vmem:[#allocation9 + $0xe8] sm:$0xff]
        %v743 = vld [vmem:[#allocation9 + $0xf0] sm:$0xff]
        %v744 = vld [vmem:[#allocation9 + $0xf8] sm:$0xff]
        %v745 = vld [vmem:[#allocation9 + $0x100] sm:$0xff]
        %v746 = vld [vmem:[#allocation9 + $0x108] sm:$0xff]
        %v747 = vld [vmem:[#allocation9 + $0x110] sm:$0xff]
        %v748 = vld [vmem:[#allocation9 + $0x118] sm:$0xff]
        %v749 = vld [vmem:[#allocation9 + $0x120] sm:$0xff]
        %v750 = vld [vmem:[#allocation9 + $0x128] sm:$0xff]
        %v751 = vld [vmem:[#allocation9 + $0x130] sm:$0xff]
        %v752 = vld [vmem:[#allocation9 + $0x138] sm:$0xff]
        %v753 = vld [vmem:[#allocation9 + $0x140] sm:$0xff]
        %v754 = vld [vmem:[#allocation9 + $0x148] sm:$0xff]
        %v755 = vld [vmem:[#allocation9 + $0x150] sm:$0xff]
        %v756 = vld [vmem:[#allocation9 + $0x158] sm:$0xff]
        %v757 = vld [vmem:[#allocation9 + $0x160] sm:$0xff]
        %v758 = vld [vmem:[#allocation9 + $0x168] sm:$0xff]
        %v759 = vld [vmem:[#allocation9 + $0x170] sm:$0xff]
        %v760 = vld [vmem:[#allocation9 + $0x178] sm:$0xff]
        %v761 = vld [vmem:[#allocation9 + $0x180] sm:$0xff]
        %v762 = vld [vmem:[#allocation9 + $0x188] sm:$0xff]
        %v763 = vld [vmem:[#allocation9 + $0x190] sm:$0xff]
        %v764 = vld [vmem:[#allocation9 + $0x198] sm:$0xff]
        %v765 = vld [vmem:[#allocation9 + $0x1a0] sm:$0xff]
        %v766 = vld [vmem:[#allocation9 + $0x1a8] sm:$0xff]
        %v767 = vld [vmem:[#allocation9 + $0x1b0] sm:$0xff]
        %v768 = vld [vmem:[#allocation9 + $0x1b8] sm:$0xff]
        %v769 = vld [vmem:[#allocation9 + $0x1c0] sm:$0xff]
        %v770 = vld [vmem:[#allocation9 + $0x1c8] sm:$0xff]
        %v771 = vld [vmem:[#allocation9 + $0x1d0] sm:$0xff]
        %v772 = vld [vmem:[#allocation9 + $0x1d8] sm:$0xff]
        %v773 = vld [vmem:[#allocation9 + $0x1e0] sm:$0xff]
        %v774 = vld [vmem:[#allocation9 + $0x1e8] sm:$0xff]
        %v775 = vld [vmem:[#allocation9 + $0x1f0] sm:$0xff]
        %v776 = vld [vmem:[#allocation9 + $0x1f8] sm:$0xff]
        %v777 = vld [vmem:[#allocation9 + $0x200] sm:$0xff]
        %v778 = vld [vmem:[#allocation9 + $0x208] sm:$0xff]
        %v779 = vld [vmem:[#allocation9 + $0x210] sm:$0xff]
        %v780 = vld [vmem:[#allocation9 + $0x218] sm:$0xff]
        %v781 = vld [vmem:[#allocation9 + $0x220] sm:$0xff]
        %v782 = vld [vmem:[#allocation9 + $0x228] sm:$0xff]
        %v783 = vld [vmem:[#allocation9 + $0x230] sm:$0xff]
        %v784 = vld [vmem:[#allocation9 + $0x238] sm:$0xff]
        %v785 = vld [vmem:[#allocation9 + $0x240] sm:$0xff]
        %v786 = vld [vmem:[#allocation9 + $0x248] sm:$0xff]
        %v787 = vld [vmem:[#allocation9 + $0x250] sm:$0xff]
        %v788 = vld [vmem:[#allocation9 + $0x258] sm:$0xff]
        %v789 = vld [vmem:[#allocation9 + $0x260] sm:$0xff]
        %v790 = vld [vmem:[#allocation9 + $0x268] sm:$0xff]
        %v791 = vld [vmem:[#allocation9 + $0x270] sm:$0xff]
        %v792 = vld [vmem:[#allocation9 + $0x278] sm:$0xff]
        %v793 = vld [vmem:[#allocation9 + $0x280] sm:$0xff]
        %v794 = vld [vmem:[#allocation9 + $0x288] sm:$0xff]
        %v795 = vld [vmem:[#allocation9 + $0x290] sm:$0xff]
        %v796 = vld [vmem:[#allocation9 + $0x298] sm:$0xff]
        %v797 = vld [vmem:[#allocation9 + $0x2a0] sm:$0xff]
        %v798 = vld [vmem:[#allocation9 + $0x2a8] sm:$0xff]
        %v799 = vld [vmem:[#allocation9 + $0x2b0] sm:$0xff]
        %v800 = vld [vmem:[#allocation9 + $0x2b8] sm:$0xff]
        %v801 = vld [vmem:[#allocation9 + $0x2c0] sm:$0xff]
        %v802 = vld [vmem:[#allocation9 + $0x2c8] sm:$0xff]
        %v803 = vld [vmem:[#allocation9 + $0x2d0] sm:$0xff]
        %v804 = vld [vmem:[#allocation9 + $0x2d8] sm:$0xff]
        %v805 = vld [vmem:[#allocation9 + $0x2e0] sm:$0xff]
        %v806 = vld [vmem:[#allocation9 + $0x2e8] sm:$0xff]
        %v807 = vld [vmem:[#allocation9 + $0x2f0] sm:$0xff]
        %v808 = vld [vmem:[#allocation9 + $0x2f8] sm:$0xff]
        %v809 = vld [vmem:[#allocation9 + $0x300] sm:$0xff]
        %v810 = vld [vmem:[#allocation9 + $0x308] sm:$0xff]
        %v811 = vld [vmem:[#allocation9 + $0x310] sm:$0xff]
        %v812 = vld [vmem:[#allocation9 + $0x318] sm:$0xff]
        %v813 = vld [vmem:[#allocation9 + $0x320] sm:$0xff]
        %v814 = vld [vmem:[#allocation9 + $0x328] sm:$0xff]
        %v815 = vld [vmem:[#allocation9 + $0x330] sm:$0xff]
        %v816 = vld [vmem:[#allocation9 + $0x338] sm:$0xff]
        %v817 = vld [vmem:[#allocation9 + $0x340] sm:$0xff]
        %v818 = vld [vmem:[#allocation9 + $0x348] sm:$0xff]
        %v819 = vld [vmem:[#allocation9 + $0x350] sm:$0xff]
        %v820 = vld [vmem:[#allocation9 + $0x358] sm:$0xff]
        %v821 = vld [vmem:[#allocation9 + $0x360] sm:$0xff]
        %v822 = vld [vmem:[#allocation9 + $0x368] sm:$0xff]
        %v823 = vld [vmem:[#allocation9 + $0x370] sm:$0xff]
        %v824 = vld [vmem:[#allocation9 + $0x378] sm:$0xff]
        %v825 = vld [vmem:[#allocation9 + $0x380] sm:$0xff]
        %v826 = vld [vmem:[#allocation9 + $0x388] sm:$0xff]
        %v827 = vld [vmem:[#allocation9 + $0x390] sm:$0xff]
        %v828 = vld [vmem:[#allocation9 + $0x398] sm:$0xff]
        %v829 = vld [vmem:[#allocation9 + $0x3a0] sm:$0xff]
        %v830 = vld [vmem:[#allocation9 + $0x3a8] sm:$0xff]
        %v831 = vld [vmem:[#allocation9 + $0x3b0] sm:$0xff]
        %v832 = vld [vmem:[#allocation9 + $0x3b8] sm:$0xff]
        %v833 = vld [vmem:[#allocation9 + $0x3c0] sm:$0xff]
        %v834 = vld [vmem:[#allocation9 + $0x3c8] sm:$0xff]
        %v835 = vld [vmem:[#allocation9 + $0x3d0] sm:$0xff]
        %v836 = vld [vmem:[#allocation9 + $0x3d8] sm:$0xff]
        %v837 = vld [vmem:[#allocation9 + $0x3e0] sm:$0xff]
        %v838 = vld [vmem:[#allocation9 + $0x3e8] sm:$0xff]
        %v839 = vld [vmem:[#allocation9 + $0x3f0] sm:$0xff]
        %v840 = vld [vmem:[#allocation9 + $0x3f8] sm:$0xff]
        %v841 = vld [vmem:[#allocation9 + $0x400] sm:$0xff]
        %v842 = vld [vmem:[#allocation9 + $0x408] sm:$0xff]
        %v843 = vld [vmem:[#allocation9 + $0x410] sm:$0xff]
        %v844 = vld [vmem:[#allocation9 + $0x418] sm:$0xff]
        %v845 = vld [vmem:[#allocation9 + $0x420] sm:$0xff]
        %v846 = vld [vmem:[#allocation9 + $0x428] sm:$0xff]
        %v847 = vld [vmem:[#allocation9 + $0x430] sm:$0xff]
        %v848 = vld [vmem:[#allocation9 + $0x438] sm:$0xff]
        %v849 = vld [vmem:[#allocation9 + $0x440] sm:$0xff]
        %v850 = vld [vmem:[#allocation9 + $0x448] sm:$0xff]
        %v851 = vld [vmem:[#allocation9 + $0x450] sm:$0xff]
        %v852 = vld [vmem:[#allocation9 + $0x458] sm:$0xff]
        %v853 = vld [vmem:[#allocation9 + $0x460] sm:$0xff]
        %v854 = vld [vmem:[#allocation9 + $0x468] sm:$0xff]
        %v855 = vld [vmem:[#allocation9 + $0x470] sm:$0xff]
        %v856 = vld [vmem:[#allocation9 + $0x478] sm:$0xff]
        %v857 = vld [vmem:[#allocation9 + $0x480] sm:$0xff]
        %v858 = vld [vmem:[#allocation9 + $0x488] sm:$0xff]
        %v859 = vld [vmem:[#allocation9 + $0x490] sm:$0xff]
        %v860 = vld [vmem:[#allocation9 + $0x498] sm:$0xff]
        %v861 = vld [vmem:[#allocation9 + $0x4a0] sm:$0xff]
        %v862 = vld [vmem:[#allocation9 + $0x4a8] sm:$0xff]
        %v863 = vld [vmem:[#allocation9 + $0x4b0] sm:$0xff]
        %v864 = vld [vmem:[#allocation9 + $0x4b8] sm:$0xff]
        %v865 = vld [vmem:[#allocation9 + $0x4c0] sm:$0xff]
        %v866 = vld [vmem:[#allocation9 + $0x4c8] sm:$0xff]
        %v867 = vld [vmem:[#allocation9 + $0x4d0] sm:$0xff]
        %v868 = vld [vmem:[#allocation9 + $0x4d8] sm:$0xff]
        %v869 = vld [vmem:[#allocation9 + $0x4e0] sm:$0xff]
        %v870 = vld [vmem:[#allocation9 + $0x4e8] sm:$0xff]
        %v871 = vld [vmem:[#allocation9 + $0x4f0] sm:$0xff]
        %v872 = vld [vmem:[#allocation9 + $0x4f8] sm:$0xff]
        %v873 = vld [vmem:[#allocation9 + $0x500] sm:$0xff]
        %v874 = vld [vmem:[#allocation9 + $0x508] sm:$0xff]
        %v875 = vld [vmem:[#allocation9 + $0x510] sm:$0xff]
        %v876 = vld [vmem:[#allocation9 + $0x518] sm:$0xff]
        %v877 = vld [vmem:[#allocation9 + $0x520] sm:$0xff]
        %v878 = vld [vmem:[#allocation9 + $0x528] sm:$0xff]
        %v879 = vld [vmem:[#allocation9 + $0x530] sm:$0xff]
        %v880 = vld [vmem:[#allocation9 + $0x538] sm:$0xff]
        %v881 = vld [vmem:[#allocation9 + $0x540] sm:$0xff]
        %v882 = vld [vmem:[#allocation9 + $0x548] sm:$0xff]
        %v883 = vld [vmem:[#allocation9 + $0x550] sm:$0xff]
        %v884 = vld [vmem:[#allocation9 + $0x558] sm:$0xff]
        %v885 = vld [vmem:[#allocation9 + $0x560] sm:$0xff]
        %v886 = vld [vmem:[#allocation9 + $0x568] sm:$0xff]
        %v887 = vld [vmem:[#allocation9 + $0x570] sm:$0xff]
        %v888 = vld [vmem:[#allocation9 + $0x578] sm:$0xff]
        %v889 = vld [vmem:[#allocation9 + $0x580] sm:$0xff]
        %v890 = vld [vmem:[#allocation9 + $0x588] sm:$0xff]
        %v891 = vld [vmem:[#allocation9 + $0x590] sm:$0xff]
        %v892 = vld [vmem:[#allocation9 + $0x598] sm:$0xff]
        %v893 = vld [vmem:[#allocation9 + $0x5a0] sm:$0xff]
        %v894 = vld [vmem:[#allocation9 + $0x5a8] sm:$0xff]
        %v895 = vld [vmem:[#allocation9 + $0x5b0] sm:$0xff]
        %v896 = vld [vmem:[#allocation9 + $0x5b8] sm:$0xff]
        %v897 = vld [vmem:[#allocation9 + $0x5c0] sm:$0xff]
        %v898 = vld [vmem:[#allocation9 + $0x5c8] sm:$0xff]
        %v899 = vld [vmem:[#allocation9 + $0x5d0] sm:$0xff]
        %v900 = vld [vmem:[#allocation9 + $0x5d8] sm:$0xff]
        %v901 = vld [vmem:[#allocation9 + $0x5e0] sm:$0xff]
        %v902 = vld [vmem:[#allocation9 + $0x5e8] sm:$0xff]
        %v903 = vld [vmem:[#allocation9 + $0x5f0] sm:$0xff]
        %v904 = vld [vmem:[#allocation9 + $0x5f8] sm:$0xff]
        %v905 = vld [vmem:[#allocation9 + $0x600] sm:$0xff]
        %v906 = vld [vmem:[#allocation9 + $0x608] sm:$0xff]
        %v907 = vld [vmem:[#allocation9 + $0x610] sm:$0xff]
        %v908 = vld [vmem:[#allocation9 + $0x618] sm:$0xff]
        %v909 = vld [vmem:[#allocation9 + $0x620] sm:$0xff]
        %v910 = vld [vmem:[#allocation9 + $0x628] sm:$0xff]
        %v911 = vld [vmem:[#allocation9 + $0x630] sm:$0xff]
        %v912 = vld [vmem:[#allocation9 + $0x638] sm:$0xff]
        %v913 = vld [vmem:[#allocation9 + $0x640] sm:$0xff]
        %v914 = vld [vmem:[#allocation9 + $0x648] sm:$0xff]
        %v915 = vld [vmem:[#allocation9 + $0x650] sm:$0xff]
        %v916 = vld [vmem:[#allocation9 + $0x658] sm:$0xff]
        %v917 = vld [vmem:[#allocation9 + $0x660] sm:$0xff]
        %v918 = vld [vmem:[#allocation9 + $0x668] sm:$0xff]
        %v919 = vld [vmem:[#allocation9 + $0x670] sm:$0xff]
        %v920 = vld [vmem:[#allocation9 + $0x678] sm:$0xff]
        %v921 = vld [vmem:[#allocation9 + $0x680] sm:$0xff]
        %v922 = vld [vmem:[#allocation9 + $0x688] sm:$0xff]
        %v923 = vld [vmem:[#allocation9 + $0x690] sm:$0xff]
        %v924 = vld [vmem:[#allocation9 + $0x698] sm:$0xff]
        %v925 = vld [vmem:[#allocation9 + $0x6a0] sm:$0xff]
        %v926 = vld [vmem:[#allocation9 + $0x6a8] sm:$0xff]
        %v927 = vld [vmem:[#allocation9 + $0x6b0] sm:$0xff]
        %v928 = vld [vmem:[#allocation9 + $0x6b8] sm:$0xff]
        %v929 = vld [vmem:[#allocation9 + $0x6c0] sm:$0xff]
        %v930 = vld [vmem:[#allocation9 + $0x6c8] sm:$0xff]
        %v931 = vld [vmem:[#allocation9 + $0x6d0] sm:$0xff]
        %v932 = vld [vmem:[#allocation9 + $0x6d8] sm:$0xff]
        %v933 = vld [vmem:[#allocation9 + $0x6e0] sm:$0xff]
        %v934 = vld [vmem:[#allocation9 + $0x6e8] sm:$0xff]
        %v935 = vld [vmem:[#allocation9 + $0x6f0] sm:$0xff]
        %v936 = vld [vmem:[#allocation9 + $0x6f8] sm:$0xff]
        %v937 = vld [vmem:[#allocation9 + $0x700] sm:$0xff]
        %v938 = vld [vmem:[#allocation9 + $0x708] sm:$0xff]
        %v939 = vld [vmem:[#allocation9 + $0x710] sm:$0xff]
        %v940 = vld [vmem:[#allocation9 + $0x718] sm:$0xff]
        %v941 = vld [vmem:[#allocation9 + $0x720] sm:$0xff]
        %v942 = vld [vmem:[#allocation9 + $0x728] sm:$0xff]
        %v943 = vld [vmem:[#allocation9 + $0x730] sm:$0xff]
        %v944 = vld [vmem:[#allocation9 + $0x738] sm:$0xff]
        %v945 = vld [vmem:[#allocation9 + $0x740] sm:$0xff]
        %v946 = vld [vmem:[#allocation9 + $0x748] sm:$0xff]
        %v947 = vld [vmem:[#allocation9 + $0x750] sm:$0xff]
        %v948 = vld [vmem:[#allocation9 + $0x758] sm:$0xff]
        %v949 = vld [vmem:[#allocation9 + $0x760] sm:$0xff]
        %v950 = vld [vmem:[#allocation9 + $0x768] sm:$0xff]
        %v951 = vld [vmem:[#allocation9 + $0x770] sm:$0xff]
        %v952 = vld [vmem:[#allocation9 + $0x778] sm:$0xff]
        %v953 = vld [vmem:[#allocation9 + $0x780] sm:$0xff]
        %v954 = vld [vmem:[#allocation9 + $0x788] sm:$0xff]
        %v955 = vld [vmem:[#allocation9 + $0x790] sm:$0xff]
        %v956 = vld [vmem:[#allocation9 + $0x798] sm:$0xff]
        %v957 = vld [vmem:[#allocation9 + $0x7a0] sm:$0xff]
        %v958 = vld [vmem:[#allocation9 + $0x7a8] sm:$0xff]
        %v959 = vld [vmem:[#allocation9 + $0x7b0] sm:$0xff]
        %v960 = vld [vmem:[#allocation9 + $0x7b8] sm:$0xff]
        %v961 = vld [vmem:[#allocation9 + $0x7c0] sm:$0xff]
        %v962 = vld [vmem:[#allocation9 + $0x7c8] sm:$0xff]
        %v963 = vld [vmem:[#allocation9 + $0x7d0] sm:$0xff]
        %v964 = vld [vmem:[#allocation9 + $0x7d8] sm:$0xff]
        %v965 = vld [vmem:[#allocation9 + $0x7e0] sm:$0xff]
        %v966 = vld [vmem:[#allocation9 + $0x7e8] sm:$0xff]
        %v967 = vld [vmem:[#allocation9 + $0x7f0] sm:$0xff]
        %v968 = vld [vmem:[#allocation9 + $0x7f8] sm:$0xff]
        %v969 = vld [vmem:[#allocation9 + $0x800] sm:$0xff]
        %v970 = vld [vmem:[#allocation9 + $0x808] sm:$0xff]
        %v971 = vld [vmem:[#allocation9 + $0x810] sm:$0xff]
        %v972 = vld [vmem:[#allocation9 + $0x818] sm:$0xff]
        %v973 = vld [vmem:[#allocation9 + $0x820] sm:$0xff]
        %v974 = vld [vmem:[#allocation9 + $0x828] sm:$0xff]
        %v975 = vld [vmem:[#allocation9 + $0x830] sm:$0xff]
        %v976 = vld [vmem:[#allocation9 + $0x838] sm:$0xff]
        %v977 = vld [vmem:[#allocation9 + $0x840] sm:$0xff]
        %v978 = vld [vmem:[#allocation9 + $0x848] sm:$0xff]
        %v979 = vld [vmem:[#allocation9 + $0x850] sm:$0xff]
        %v980 = vld [vmem:[#allocation9 + $0x858] sm:$0xff]
        %v981 = vld [vmem:[#allocation9 + $0x860] sm:$0xff]
        %v982 = vld [vmem:[#allocation9 + $0x868] sm:$0xff]
        %v983 = vld [vmem:[#allocation9 + $0x870] sm:$0xff]
        %v984 = vld [vmem:[#allocation9 + $0x878] sm:$0xff]
        %v985 = vld [vmem:[#allocation9 + $0x880] sm:$0xff]
        %v986 = vld [vmem:[#allocation9 + $0x888] sm:$0xff]
        %v987 = vld [vmem:[#allocation9 + $0x890] sm:$0xff]
        %v988 = vld [vmem:[#allocation9 + $0x898] sm:$0xff]
        %v989 = vld [vmem:[#allocation9 + $0x8a0] sm:$0xff]
        %v990 = vld [vmem:[#allocation9 + $0x8a8] sm:$0xff]
        %v991 = vld [vmem:[#allocation9 + $0x8b0] sm:$0xff]
        %v992 = vld [vmem:[#allocation9 + $0x8b8] sm:$0xff]
        %v993 = vld [vmem:[#allocation9 + $0x8c0] sm:$0xff]
        %v994 = vld [vmem:[#allocation9 + $0x8c8] sm:$0xff]
        %v995 = vld [vmem:[#allocation9 + $0x8d0] sm:$0xff]
        %v996 = vld [vmem:[#allocation9 + $0x8d8] sm:$0xff]
        %v997 = vld [vmem:[#allocation9 + $0x8e0] sm:$0xff]
        %v998 = vld [vmem:[#allocation9 + $0x8e8] sm:$0xff]
        %v999 = vld [vmem:[#allocation9 + $0x8f0] sm:$0xff]
        %v1000 = vld [vmem:[#allocation9 + $0x8f8] sm:$0xff]
        %s1001 = sld [smem:[#allocation3]]
        %v1002 = vstv %s1001
        %v1291 = vunpack.c.l.b16 %v713
        %v1292 = vunpack.c.h.b16 %v713
        %v1293 = vunpack.c.l.b16 %v714
        %v1294 = vunpack.c.h.b16 %v714
        %v1295 = vunpack.c.l.b16 %v715
        %v1296 = vunpack.c.h.b16 %v715
        %v1297 = vunpack.c.l.b16 %v716
        %v1298 = vunpack.c.h.b16 %v716
        %v1299 = vunpack.c.l.b16 %v717
        %v1300 = vunpack.c.h.b16 %v717
        %v1301 = vunpack.c.l.b16 %v718
        %v1302 = vunpack.c.h.b16 %v718
        %v1303 = vunpack.c.l.b16 %v719
        %v1304 = vunpack.c.h.b16 %v719
        %v1305 = vunpack.c.l.b16 %v720
        %v1306 = vunpack.c.h.b16 %v720
        %v1307 = vunpack.c.l.b16 %v721
        %v1308 = vunpack.c.h.b16 %v721
        %v1309 = vunpack.c.l.b16 %v722
        %v1310 = vunpack.c.h.b16 %v722
        %v1311 = vunpack.c.l.b16 %v723
        %v1312 = vunpack.c.h.b16 %v723
        %v1313 = vunpack.c.l.b16 %v724
        %v1314 = vunpack.c.h.b16 %v724
        %v1315 = vunpack.c.l.b16 %v725
        %v1316 = vunpack.c.h.b16 %v725
        %v1317 = vunpack.c.l.b16 %v726
        %v1318 = vunpack.c.h.b16 %v726
        %v1319 = vunpack.c.l.b16 %v727
        %v1320 = vunpack.c.h.b16 %v727
        %v1321 = vunpack.c.l.b16 %v728
        %v1322 = vunpack.c.h.b16 %v728
        %v1323 = vunpack.c.l.b16 %v729
        %v1324 = vunpack.c.h.b16 %v729
        %v1325 = vunpack.c.l.b16 %v730
        %v1326 = vunpack.c.h.b16 %v730
        %v1327 = vunpack.c.l.b16 %v731
        %v1328 = vunpack.c.h.b16 %v731
        %v1329 = vunpack.c.l.b16 %v732
        %v1330 = vunpack.c.h.b16 %v732
        %v1331 = vunpack.c.l.b16 %v733
        %v1332 = vunpack.c.h.b16 %v733
        %v1333 = vunpack.c.l.b16 %v734
        %v1334 = vunpack.c.h.b16 %v734
        %v1335 = vunpack.c.l.b16 %v735
        %v1336 = vunpack.c.h.b16 %v735
        %v1337 = vunpack.c.l.b16 %v736
        %v1338 = vunpack.c.h.b16 %v736
        %v1339 = vunpack.c.l.b16 %v737
        %v1340 = vunpack.c.h.b16 %v737
        %v1341 = vunpack.c.l.b16 %v738
        %v1342 = vunpack.c.h.b16 %v738
        %v1343 = vunpack.c.l.b16 %v739
        %v1344 = vunpack.c.h.b16 %v739
        %v1345 = vunpack.c.l.b16 %v740
        %v1346 = vunpack.c.h.b16 %v740
        %v1347 = vunpack.c.l.b16 %v741
        %v1348 = vunpack.c.h.b16 %v741
        %v1349 = vunpack.c.l.b16 %v742
        %v1350 = vunpack.c.h.b16 %v742
        %v1351 = vunpack.c.l.b16 %v743
        %v1352 = vunpack.c.h.b16 %v743
        %v1353 = vunpack.c.l.b16 %v744
        %v1354 = vunpack.c.h.b16 %v744
        %v1355 = vunpack.c.l.b16 %v745
        %v1356 = vunpack.c.h.b16 %v745
        %v1357 = vunpack.c.l.b16 %v746
        %v1358 = vunpack.c.h.b16 %v746
        %v1359 = vunpack.c.l.b16 %v747
        %v1360 = vunpack.c.h.b16 %v747
        %v1361 = vunpack.c.l.b16 %v748
        %v1362 = vunpack.c.h.b16 %v748
        %v1363 = vunpack.c.l.b16 %v749
        %v1364 = vunpack.c.h.b16 %v749
        %v1365 = vunpack.c.l.b16 %v750
        %v1366 = vunpack.c.h.b16 %v750
        %v1367 = vunpack.c.l.b16 %v751
        %v1368 = vunpack.c.h.b16 %v751
        %v1369 = vunpack.c.l.b16 %v752
        %v1370 = vunpack.c.h.b16 %v752
        %v1371 = vunpack.c.l.b16 %v753
        %v1372 = vunpack.c.h.b16 %v753
        %v1373 = vunpack.c.l.b16 %v754
        %v1374 = vunpack.c.h.b16 %v754
        %v1375 = vunpack.c.l.b16 %v755
        %v1376 = vunpack.c.h.b16 %v755
        %v1377 = vunpack.c.l.b16 %v756
        %v1378 = vunpack.c.h.b16 %v756
        %v1379 = vunpack.c.l.b16 %v757
        %v1380 = vunpack.c.h.b16 %v757
        %v1381 = vunpack.c.l.b16 %v758
        %v1382 = vunpack.c.h.b16 %v758
        %v1383 = vunpack.c.l.b16 %v759
        %v1384 = vunpack.c.h.b16 %v759
        %v1385 = vunpack.c.l.b16 %v760
        %v1386 = vunpack.c.h.b16 %v760
        %v1387 = vunpack.c.l.b16 %v761
        %v1388 = vunpack.c.h.b16 %v761
        %v1389 = vunpack.c.l.b16 %v762
        %v1390 = vunpack.c.h.b16 %v762
        %v1391 = vunpack.c.l.b16 %v763
        %v1392 = vunpack.c.h.b16 %v763
        %v1393 = vunpack.c.l.b16 %v764
        %v1394 = vunpack.c.h.b16 %v764
        %v1395 = vunpack.c.l.b16 %v765
        %v1396 = vunpack.c.h.b16 %v765
        %v1397 = vunpack.c.l.b16 %v766
        %v1398 = vunpack.c.h.b16 %v766
        %v1399 = vunpack.c.l.b16 %v767
        %v1400 = vunpack.c.h.b16 %v767
        %v1401 = vunpack.c.l.b16 %v768
        %v1402 = vunpack.c.h.b16 %v768
        %v1403 = vunpack.c.l.b16 %v769
        %v1404 = vunpack.c.h.b16 %v769
        %v1405 = vunpack.c.l.b16 %v770
        %v1406 = vunpack.c.h.b16 %v770
        %v1407 = vunpack.c.l.b16 %v771
        %v1408 = vunpack.c.h.b16 %v771
        %v1409 = vunpack.c.l.b16 %v772
        %v1410 = vunpack.c.h.b16 %v772
        %v1411 = vunpack.c.l.b16 %v773
        %v1412 = vunpack.c.h.b16 %v773
        %v1413 = vunpack.c.l.b16 %v774
        %v1414 = vunpack.c.h.b16 %v774
        %v1415 = vunpack.c.l.b16 %v775
        %v1416 = vunpack.c.h.b16 %v775
        %v1417 = vunpack.c.l.b16 %v776
        %v1418 = vunpack.c.h.b16 %v776
        %v1419 = vunpack.c.l.b16 %v777
        %v1420 = vunpack.c.h.b16 %v777
        %v1421 = vunpack.c.l.b16 %v778
        %v1422 = vunpack.c.h.b16 %v778
        %v1423 = vunpack.c.l.b16 %v779
        %v1424 = vunpack.c.h.b16 %v779
        %v1425 = vunpack.c.l.b16 %v780
        %v1426 = vunpack.c.h.b16 %v780
        %v1427 = vunpack.c.l.b16 %v781
        %v1428 = vunpack.c.h.b16 %v781
        %v1429 = vunpack.c.l.b16 %v782
        %v1430 = vunpack.c.h.b16 %v782
        %v1431 = vunpack.c.l.b16 %v783
        %v1432 = vunpack.c.h.b16 %v783
        %v1433 = vunpack.c.l.b16 %v784
        %v1434 = vunpack.c.h.b16 %v784
        %v1435 = vunpack.c.l.b16 %v785
        %v1436 = vunpack.c.h.b16 %v785
        %v1437 = vunpack.c.l.b16 %v786
        %v1438 = vunpack.c.h.b16 %v786
        %v1439 = vunpack.c.l.b16 %v787
        %v1440 = vunpack.c.h.b16 %v787
        %v1441 = vunpack.c.l.b16 %v788
        %v1442 = vunpack.c.h.b16 %v788
        %v1443 = vunpack.c.l.b16 %v789
        %v1444 = vunpack.c.h.b16 %v789
        %v1445 = vunpack.c.l.b16 %v790
        %v1446 = vunpack.c.h.b16 %v790
        %v1447 = vunpack.c.l.b16 %v791
        %v1448 = vunpack.c.h.b16 %v791
        %v1449 = vunpack.c.l.b16 %v792
        %v1450 = vunpack.c.h.b16 %v792
        %v1451 = vunpack.c.l.b16 %v793
        %v1452 = vunpack.c.h.b16 %v793
        %v1453 = vunpack.c.l.b16 %v794
        %v1454 = vunpack.c.h.b16 %v794
        %v1455 = vunpack.c.l.b16 %v795
        %v1456 = vunpack.c.h.b16 %v795
        %v1457 = vunpack.c.l.b16 %v796
        %v1458 = vunpack.c.h.b16 %v796
        %v1459 = vunpack.c.l.b16 %v797
        %v1460 = vunpack.c.h.b16 %v797
        %v1461 = vunpack.c.l.b16 %v798
        %v1462 = vunpack.c.h.b16 %v798
        %v1463 = vunpack.c.l.b16 %v799
        %v1464 = vunpack.c.h.b16 %v799
        %v1465 = vunpack.c.l.b16 %v800
        %v1466 = vunpack.c.h.b16 %v800
        %v1467 = vunpack.c.l.b16 %v801
        %v1468 = vunpack.c.h.b16 %v801
        %v1469 = vunpack.c.l.b16 %v802
        %v1470 = vunpack.c.h.b16 %v802
        %v1471 = vunpack.c.l.b16 %v803
        %v1472 = vunpack.c.h.b16 %v803
        %v1473 = vunpack.c.l.b16 %v804
        %v1474 = vunpack.c.h.b16 %v804
        %v1475 = vunpack.c.l.b16 %v805
        %v1476 = vunpack.c.h.b16 %v805
        %v1477 = vunpack.c.l.b16 %v806
        %v1478 = vunpack.c.h.b16 %v806
        %v1479 = vunpack.c.l.b16 %v807
        %v1480 = vunpack.c.h.b16 %v807
        %v1481 = vunpack.c.l.b16 %v808
        %v1482 = vunpack.c.h.b16 %v808
        %v1483 = vunpack.c.l.b16 %v809
        %v1484 = vunpack.c.h.b16 %v809
        %v1485 = vunpack.c.l.b16 %v810
        %v1486 = vunpack.c.h.b16 %v810
        %v1487 = vunpack.c.l.b16 %v811
        %v1488 = vunpack.c.h.b16 %v811
        %v1489 = vunpack.c.l.b16 %v812
        %v1490 = vunpack.c.h.b16 %v812
        %v1491 = vunpack.c.l.b16 %v813
        %v1492 = vunpack.c.h.b16 %v813
        %v1493 = vunpack.c.l.b16 %v814
        %v1494 = vunpack.c.h.b16 %v814
        %v1495 = vunpack.c.l.b16 %v815
        %v1496 = vunpack.c.h.b16 %v815
        %v1497 = vunpack.c.l.b16 %v816
        %v1498 = vunpack.c.h.b16 %v816
        %v1499 = vunpack.c.l.b16 %v817
        %v1500 = vunpack.c.h.b16 %v817
        %v1501 = vunpack.c.l.b16 %v818
        %v1502 = vunpack.c.h.b16 %v818
        %v1503 = vunpack.c.l.b16 %v819
        %v1504 = vunpack.c.h.b16 %v819
        %v1505 = vunpack.c.l.b16 %v820
        %v1506 = vunpack.c.h.b16 %v820
        %v1507 = vunpack.c.l.b16 %v821
        %v1508 = vunpack.c.h.b16 %v821
        %v1509 = vunpack.c.l.b16 %v822
        %v1510 = vunpack.c.h.b16 %v822
        %v1511 = vunpack.c.l.b16 %v823
        %v1512 = vunpack.c.h.b16 %v823
        %v1513 = vunpack.c.l.b16 %v824
        %v1514 = vunpack.c.h.b16 %v824
        %v1515 = vunpack.c.l.b16 %v825
        %v1516 = vunpack.c.h.b16 %v825
        %v1517 = vunpack.c.l.b16 %v826
        %v1518 = vunpack.c.h.b16 %v826
        %v1519 = vunpack.c.l.b16 %v827
        %v1520 = vunpack.c.h.b16 %v827
        %v1521 = vunpack.c.l.b16 %v828
        %v1522 = vunpack.c.h.b16 %v828
        %v1523 = vunpack.c.l.b16 %v829
        %v1524 = vunpack.c.h.b16 %v829
        %v1525 = vunpack.c.l.b16 %v830
        %v1526 = vunpack.c.h.b16 %v830
        %v1527 = vunpack.c.l.b16 %v831
        %v1528 = vunpack.c.h.b16 %v831
        %v1529 = vunpack.c.l.b16 %v832
        %v1530 = vunpack.c.h.b16 %v832
        %v1531 = vunpack.c.l.b16 %v833
        %v1532 = vunpack.c.h.b16 %v833
        %v1533 = vunpack.c.l.b16 %v834
        %v1534 = vunpack.c.h.b16 %v834
        %v1535 = vunpack.c.l.b16 %v835
        %v1536 = vunpack.c.h.b16 %v835
        %v1537 = vunpack.c.l.b16 %v836
        %v1538 = vunpack.c.h.b16 %v836
        %v1539 = vunpack.c.l.b16 %v837
        %v1540 = vunpack.c.h.b16 %v837
        %v1541 = vunpack.c.l.b16 %v838
        %v1542 = vunpack.c.h.b16 %v838
        %v1543 = vunpack.c.l.b16 %v839
        %v1544 = vunpack.c.h.b16 %v839
        %v1545 = vunpack.c.l.b16 %v840
        %v1546 = vunpack.c.h.b16 %v840
        %v1547 = vunpack.c.l.b16 %v841
        %v1548 = vunpack.c.h.b16 %v841
        %v1549 = vunpack.c.l.b16 %v842
        %v1550 = vunpack.c.h.b16 %v842
        %v1551 = vunpack.c.l.b16 %v843
        %v1552 = vunpack.c.h.b16 %v843
        %v1553 = vunpack.c.l.b16 %v844
        %v1554 = vunpack.c.h.b16 %v844
        %v1555 = vunpack.c.l.b16 %v845
        %v1556 = vunpack.c.h.b16 %v845
        %v1557 = vunpack.c.l.b16 %v846
        %v1558 = vunpack.c.h.b16 %v846
        %v1559 = vunpack.c.l.b16 %v847
        %v1560 = vunpack.c.h.b16 %v847
        %v1561 = vunpack.c.l.b16 %v848
        %v1562 = vunpack.c.h.b16 %v848
        %v1563 = vunpack.c.l.b16 %v849
        %v1564 = vunpack.c.h.b16 %v849
        %v1565 = vunpack.c.l.b16 %v850
        %v1566 = vunpack.c.h.b16 %v850
        %v1567 = vunpack.c.l.b16 %v851
        %v1568 = vunpack.c.h.b16 %v851
        %v1569 = vunpack.c.l.b16 %v852
        %v1570 = vunpack.c.h.b16 %v852
        %v1571 = vunpack.c.l.b16 %v853
        %v1572 = vunpack.c.h.b16 %v853
        %v1573 = vunpack.c.l.b16 %v854
        %v1574 = vunpack.c.h.b16 %v854
        %v1575 = vunpack.c.l.b16 %v855
        %v1576 = vunpack.c.h.b16 %v855
        %v1577 = vunpack.c.l.b16 %v856
        %v1578 = vunpack.c.h.b16 %v856
        %v1579 = vunpack.c.l.b16 %v857
        %v1580 = vunpack.c.h.b16 %v857
        %v1581 = vunpack.c.l.b16 %v858
        %v1582 = vunpack.c.h.b16 %v858
        %v1583 = vunpack.c.l.b16 %v859
        %v1584 = vunpack.c.h.b16 %v859
        %v1585 = vunpack.c.l.b16 %v860
        %v1586 = vunpack.c.h.b16 %v860
        %v1587 = vunpack.c.l.b16 %v861
        %v1588 = vunpack.c.h.b16 %v861
        %v1589 = vunpack.c.l.b16 %v862
        %v1590 = vunpack.c.h.b16 %v862
        %v1591 = vunpack.c.l.b16 %v863
        %v1592 = vunpack.c.h.b16 %v863
        %v1593 = vunpack.c.l.b16 %v864
        %v1594 = vunpack.c.h.b16 %v864
        %v1595 = vunpack.c.l.b16 %v865
        %v1596 = vunpack.c.h.b16 %v865
        %v1597 = vunpack.c.l.b16 %v866
        %v1598 = vunpack.c.h.b16 %v866
        %v1599 = vunpack.c.l.b16 %v867
        %v1600 = vunpack.c.h.b16 %v867
        %v1601 = vunpack.c.l.b16 %v868
        %v1602 = vunpack.c.h.b16 %v868
        %v1603 = vunpack.c.l.b16 %v869
        %v1604 = vunpack.c.h.b16 %v869
        %v1605 = vunpack.c.l.b16 %v870
        %v1606 = vunpack.c.h.b16 %v870
        %v1607 = vunpack.c.l.b16 %v871
        %v1608 = vunpack.c.h.b16 %v871
        %v1609 = vunpack.c.l.b16 %v872
        %v1610 = vunpack.c.h.b16 %v872
        %v1611 = vunpack.c.l.b16 %v873
        %v1612 = vunpack.c.h.b16 %v873
        %v1613 = vunpack.c.l.b16 %v874
        %v1614 = vunpack.c.h.b16 %v874
        %v1615 = vunpack.c.l.b16 %v875
        %v1616 = vunpack.c.h.b16 %v875
        %v1617 = vunpack.c.l.b16 %v876
        %v1618 = vunpack.c.h.b16 %v876
        %v1619 = vunpack.c.l.b16 %v877
        %v1620 = vunpack.c.h.b16 %v877
        %v1621 = vunpack.c.l.b16 %v878
        %v1622 = vunpack.c.h.b16 %v878
        %v1623 = vunpack.c.l.b16 %v879
        %v1624 = vunpack.c.h.b16 %v879
        %v1625 = vunpack.c.l.b16 %v880
        %v1626 = vunpack.c.h.b16 %v880
        %v1627 = vunpack.c.l.b16 %v881
        %v1628 = vunpack.c.h.b16 %v881
        %v1629 = vunpack.c.l.b16 %v882
        %v1630 = vunpack.c.h.b16 %v882
        %v1631 = vunpack.c.l.b16 %v883
        %v1632 = vunpack.c.h.b16 %v883
        %v1633 = vunpack.c.l.b16 %v884
        %v1634 = vunpack.c.h.b16 %v884
        %v1635 = vunpack.c.l.b16 %v885
        %v1636 = vunpack.c.h.b16 %v885
        %v1637 = vunpack.c.l.b16 %v886
        %v1638 = vunpack.c.h.b16 %v886
        %v1639 = vunpack.c.l.b16 %v887
        %v1640 = vunpack.c.h.b16 %v887
        %v1641 = vunpack.c.l.b16 %v888
        %v1642 = vunpack.c.h.b16 %v888
        %v1643 = vunpack.c.l.b16 %v889
        %v1644 = vunpack.c.h.b16 %v889
        %v1645 = vunpack.c.l.b16 %v890
        %v1646 = vunpack.c.h.b16 %v890
        %v1647 = vunpack.c.l.b16 %v891
        %v1648 = vunpack.c.h.b16 %v891
        %v1649 = vunpack.c.l.b16 %v892
        %v1650 = vunpack.c.h.b16 %v892
        %v1651 = vunpack.c.l.b16 %v893
        %v1652 = vunpack.c.h.b16 %v893
        %v1653 = vunpack.c.l.b16 %v894
        %v1654 = vunpack.c.h.b16 %v894
        %v1655 = vunpack.c.l.b16 %v895
        %v1656 = vunpack.c.h.b16 %v895
        %v1657 = vunpack.c.l.b16 %v896
        %v1658 = vunpack.c.h.b16 %v896
        %v1659 = vunpack.c.l.b16 %v897
        %v1660 = vunpack.c.h.b16 %v897
        %v1661 = vunpack.c.l.b16 %v898
        %v1662 = vunpack.c.h.b16 %v898
        %v1663 = vunpack.c.l.b16 %v899
        %v1664 = vunpack.c.h.b16 %v899
        %v1665 = vunpack.c.l.b16 %v900
        %v1666 = vunpack.c.h.b16 %v900
        %v1667 = vunpack.c.l.b16 %v901
        %v1668 = vunpack.c.h.b16 %v901
        %v1669 = vunpack.c.l.b16 %v902
        %v1670 = vunpack.c.h.b16 %v902
        %v1671 = vunpack.c.l.b16 %v903
        %v1672 = vunpack.c.h.b16 %v903
        %v1673 = vunpack.c.l.b16 %v904
        %v1674 = vunpack.c.h.b16 %v904
        %v1675 = vunpack.c.l.b16 %v905
        %v1676 = vunpack.c.h.b16 %v905
        %v1677 = vunpack.c.l.b16 %v906
        %v1678 = vunpack.c.h.b16 %v906
        %v1679 = vunpack.c.l.b16 %v907
        %v1680 = vunpack.c.h.b16 %v907
        %v1681 = vunpack.c.l.b16 %v908
        %v1682 = vunpack.c.h.b16 %v908
        %v1683 = vunpack.c.l.b16 %v909
        %v1684 = vunpack.c.h.b16 %v909
        %v1685 = vunpack.c.l.b16 %v910
        %v1686 = vunpack.c.h.b16 %v910
        %v1687 = vunpack.c.l.b16 %v911
        %v1688 = vunpack.c.h.b16 %v911
        %v1689 = vunpack.c.l.b16 %v912
        %v1690 = vunpack.c.h.b16 %v912
        %v1691 = vunpack.c.l.b16 %v913
        %v1692 = vunpack.c.h.b16 %v913
        %v1693 = vunpack.c.l.b16 %v914
        %v1694 = vunpack.c.h.b16 %v914
        %v1695 = vunpack.c.l.b16 %v915
        %v1696 = vunpack.c.h.b16 %v915
        %v1697 = vunpack.c.l.b16 %v916
        %v1698 = vunpack.c.h.b16 %v916
        %v1699 = vunpack.c.l.b16 %v917
        %v1700 = vunpack.c.h.b16 %v917
        %v1701 = vunpack.c.l.b16 %v918
        %v1702 = vunpack.c.h.b16 %v918
        %v1703 = vunpack.c.l.b16 %v919
        %v1704 = vunpack.c.h.b16 %v919
        %v1705 = vunpack.c.l.b16 %v920
        %v1706 = vunpack.c.h.b16 %v920
        %v1707 = vunpack.c.l.b16 %v921
        %v1708 = vunpack.c.h.b16 %v921
        %v1709 = vunpack.c.l.b16 %v922
        %v1710 = vunpack.c.h.b16 %v922
        %v1711 = vunpack.c.l.b16 %v923
        %v1712 = vunpack.c.h.b16 %v923
        %v1713 = vunpack.c.l.b16 %v924
        %v1714 = vunpack.c.h.b16 %v924
        %v1715 = vunpack.c.l.b16 %v925
        %v1716 = vunpack.c.h.b16 %v925
        %v1717 = vunpack.c.l.b16 %v926
        %v1718 = vunpack.c.h.b16 %v926
        %v1719 = vunpack.c.l.b16 %v927
        %v1720 = vunpack.c.h.b16 %v927
        %v1721 = vunpack.c.l.b16 %v928
        %v1722 = vunpack.c.h.b16 %v928
        %v1723 = vunpack.c.l.b16 %v929
        %v1724 = vunpack.c.h.b16 %v929
        %v1725 = vunpack.c.l.b16 %v930
        %v1726 = vunpack.c.h.b16 %v930
        %v1727 = vunpack.c.l.b16 %v931
        %v1728 = vunpack.c.h.b16 %v931
        %v1729 = vunpack.c.l.b16 %v932
        %v1730 = vunpack.c.h.b16 %v932
        %v1731 = vunpack.c.l.b16 %v933
        %v1732 = vunpack.c.h.b16 %v933
        %v1733 = vunpack.c.l.b16 %v934
        %v1734 = vunpack.c.h.b16 %v934
        %v1735 = vunpack.c.l.b16 %v935
        %v1736 = vunpack.c.h.b16 %v935
        %v1737 = vunpack.c.l.b16 %v936
        %v1738 = vunpack.c.h.b16 %v936
        %v1739 = vunpack.c.l.b16 %v937
        %v1740 = vunpack.c.h.b16 %v937
        %v1741 = vunpack.c.l.b16 %v938
        %v1742 = vunpack.c.h.b16 %v938
        %v1743 = vunpack.c.l.b16 %v939
        %v1744 = vunpack.c.h.b16 %v939
        %v1745 = vunpack.c.l.b16 %v940
        %v1746 = vunpack.c.h.b16 %v940
        %v1747 = vunpack.c.l.b16 %v941
        %v1748 = vunpack.c.h.b16 %v941
        %v1749 = vunpack.c.l.b16 %v942
        %v1750 = vunpack.c.h.b16 %v942
        %v1751 = vunpack.c.l.b16 %v943
        %v1752 = vunpack.c.h.b16 %v943
        %v1753 = vunpack.c.l.b16 %v944
        %v1754 = vunpack.c.h.b16 %v944
        %v1755 = vunpack.c.l.b16 %v945
        %v1756 = vunpack.c.h.b16 %v945
        %v1757 = vunpack.c.l.b16 %v946
        %v1758 = vunpack.c.h.b16 %v946
        %v1759 = vunpack.c.l.b16 %v947
        %v1760 = vunpack.c.h.b16 %v947
        %v1761 = vunpack.c.l.b16 %v948
        %v1762 = vunpack.c.h.b16 %v948
        %v1763 = vunpack.c.l.b16 %v949
        %v1764 = vunpack.c.h.b16 %v949
        %v1765 = vunpack.c.l.b16 %v950
        %v1766 = vunpack.c.h.b16 %v950
        %v1767 = vunpack.c.l.b16 %v951
        %v1768 = vunpack.c.h.b16 %v951
        %v1769 = vunpack.c.l.b16 %v952
        %v1770 = vunpack.c.h.b16 %v952
        %v1771 = vunpack.c.l.b16 %v953
        %v1772 = vunpack.c.h.b16 %v953
        %v1773 = vunpack.c.l.b16 %v954
        %v1774 = vunpack.c.h.b16 %v954
        %v1775 = vunpack.c.l.b16 %v955
        %v1776 = vunpack.c.h.b16 %v955
        %v1777 = vunpack.c.l.b16 %v956
        %v1778 = vunpack.c.h.b16 %v956
        %v1779 = vunpack.c.l.b16 %v957
        %v1780 = vunpack.c.h.b16 %v957
        %v1781 = vunpack.c.l.b16 %v958
        %v1782 = vunpack.c.h.b16 %v958
        %v1783 = vunpack.c.l.b16 %v959
        %v1784 = vunpack.c.h.b16 %v959
        %v1785 = vunpack.c.l.b16 %v960
        %v1786 = vunpack.c.h.b16 %v960
        %v1787 = vunpack.c.l.b16 %v961
        %v1788 = vunpack.c.h.b16 %v961
        %v1789 = vunpack.c.l.b16 %v962
        %v1790 = vunpack.c.h.b16 %v962
        %v1791 = vunpack.c.l.b16 %v963
        %v1792 = vunpack.c.h.b16 %v963
        %v1793 = vunpack.c.l.b16 %v964
        %v1794 = vunpack.c.h.b16 %v964
        %v1795 = vunpack.c.l.b16 %v965
        %v1796 = vunpack.c.h.b16 %v965
        %v1797 = vunpack.c.l.b16 %v966
        %v1798 = vunpack.c.h.b16 %v966
        %v1799 = vunpack.c.l.b16 %v967
        %v1800 = vunpack.c.h.b16 %v967
        %v1801 = vunpack.c.l.b16 %v968
        %v1802 = vunpack.c.h.b16 %v968
        %v1803 = vunpack.c.l.b16 %v969
        %v1804 = vunpack.c.h.b16 %v969
        %v1805 = vunpack.c.l.b16 %v970
        %v1806 = vunpack.c.h.b16 %v970
        %v1807 = vunpack.c.l.b16 %v971
        %v1808 = vunpack.c.h.b16 %v971
        %v1809 = vunpack.c.l.b16 %v972
        %v1810 = vunpack.c.h.b16 %v972
        %v1811 = vunpack.c.l.b16 %v973
        %v1812 = vunpack.c.h.b16 %v973
        %v1813 = vunpack.c.l.b16 %v974
        %v1814 = vunpack.c.h.b16 %v974
        %v1815 = vunpack.c.l.b16 %v975
        %v1816 = vunpack.c.h.b16 %v975
        %v1817 = vunpack.c.l.b16 %v976
        %v1818 = vunpack.c.h.b16 %v976
        %v1819 = vunpack.c.l.b16 %v977
        %v1820 = vunpack.c.h.b16 %v977
        %v1821 = vunpack.c.l.b16 %v978
        %v1822 = vunpack.c.h.b16 %v978
        %v1823 = vunpack.c.l.b16 %v979
        %v1824 = vunpack.c.h.b16 %v979
        %v1825 = vunpack.c.l.b16 %v980
        %v1826 = vunpack.c.h.b16 %v980
        %v1827 = vunpack.c.l.b16 %v981
        %v1828 = vunpack.c.h.b16 %v981
        %v1829 = vunpack.c.l.b16 %v982
        %v1830 = vunpack.c.h.b16 %v982
        %v1831 = vunpack.c.l.b16 %v983
        %v1832 = vunpack.c.h.b16 %v983
        %v1833 = vunpack.c.l.b16 %v984
        %v1834 = vunpack.c.h.b16 %v984
        %v1835 = vunpack.c.l.b16 %v985
        %v1836 = vunpack.c.h.b16 %v985
        %v1837 = vunpack.c.l.b16 %v986
        %v1838 = vunpack.c.h.b16 %v986
        %v1839 = vunpack.c.l.b16 %v987
        %v1840 = vunpack.c.h.b16 %v987
        %v1841 = vunpack.c.l.b16 %v988
        %v1842 = vunpack.c.h.b16 %v988
        %v1843 = vunpack.c.l.b16 %v989
        %v1844 = vunpack.c.h.b16 %v989
        %v1845 = vunpack.c.l.b16 %v990
        %v1846 = vunpack.c.h.b16 %v990
        %v1847 = vunpack.c.l.b16 %v991
        %v1848 = vunpack.c.h.b16 %v991
        %v1849 = vunpack.c.l.b16 %v992
        %v1850 = vunpack.c.h.b16 %v992
        %v1851 = vunpack.c.l.b16 %v993
        %v1852 = vunpack.c.h.b16 %v993
        %v1853 = vunpack.c.l.b16 %v994
        %v1854 = vunpack.c.h.b16 %v994
        %v1855 = vunpack.c.l.b16 %v995
        %v1856 = vunpack.c.h.b16 %v995
        %v1857 = vunpack.c.l.b16 %v996
        %v1858 = vunpack.c.h.b16 %v996
        %v1859 = vunpack.c.l.b16 %v997
        %v1860 = vunpack.c.h.b16 %v997
        %v1861 = vunpack.c.l.b16 %v998
        %v1862 = vunpack.c.h.b16 %v998
        %v1863 = vunpack.c.l.b16 %v999
        %v1864 = vunpack.c.h.b16 %v999
        %v1865 = vunpack.c.l.b16 %v1000
        %v1866 = vunpack.c.h.b16 %v1000
        %v1867 = vpack.c.b16 %v1297, %v1291
        %v1868 = vpack.c.b16 %v1298, %v1292
        %v1869 = vpack.c.b16 %v1299, %v1293
        %v1870 = vpack.c.b16 %v1300, %v1294
        %v1871 = vpack.c.b16 %v1301, %v1295
        %v1872 = vpack.c.b16 %v1302, %v1296
        %v1873 = vpack.c.b16 %v1309, %v1303
        %v1874 = vpack.c.b16 %v1310, %v1304
        %v1875 = vpack.c.b16 %v1311, %v1305
        %v1876 = vpack.c.b16 %v1312, %v1306
        %v1877 = vpack.c.b16 %v1313, %v1307
        %v1878 = vpack.c.b16 %v1314, %v1308
        %v1879 = vpack.c.b16 %v1321, %v1315
        %v1880 = vpack.c.b16 %v1322, %v1316
        %v1881 = vpack.c.b16 %v1323, %v1317
        %v1882 = vpack.c.b16 %v1324, %v1318
        %v1883 = vpack.c.b16 %v1325, %v1319
        %v1884 = vpack.c.b16 %v1326, %v1320
        %v1885 = vpack.c.b16 %v1333, %v1327
        %v1886 = vpack.c.b16 %v1334, %v1328
        %v1887 = vpack.c.b16 %v1335, %v1329
        %v1888 = vpack.c.b16 %v1336, %v1330
        %v1889 = vpack.c.b16 %v1337, %v1331
        %v1890 = vpack.c.b16 %v1338, %v1332
        %v1891 = vpack.c.b16 %v1345, %v1339
        %v1892 = vpack.c.b16 %v1346, %v1340
        %v1893 = vpack.c.b16 %v1347, %v1341
        %v1894 = vpack.c.b16 %v1348, %v1342
        %v1895 = vpack.c.b16 %v1349, %v1343
        %v1896 = vpack.c.b16 %v1350, %v1344
        %v1897 = vpack.c.b16 %v1357, %v1351
        %v1898 = vpack.c.b16 %v1358, %v1352
        %v1899 = vpack.c.b16 %v1359, %v1353
        %v1900 = vpack.c.b16 %v1360, %v1354
        %v1901 = vpack.c.b16 %v1361, %v1355
        %v1902 = vpack.c.b16 %v1362, %v1356
        %v1903 = vpack.c.b16 %v1369, %v1363
        %v1904 = vpack.c.b16 %v1370, %v1364
        %v1905 = vpack.c.b16 %v1371, %v1365
        %v1906 = vpack.c.b16 %v1372, %v1366
        %v1907 = vpack.c.b16 %v1373, %v1367
        %v1908 = vpack.c.b16 %v1374, %v1368
        %v1909 = vpack.c.b16 %v1381, %v1375
        %v1910 = vpack.c.b16 %v1382, %v1376
        %v1911 = vpack.c.b16 %v1383, %v1377
        %v1912 = vpack.c.b16 %v1384, %v1378
        %v1913 = vpack.c.b16 %v1385, %v1379
        %v1914 = vpack.c.b16 %v1386, %v1380
        %v1915 = vpack.c.b16 %v1393, %v1387
        %v1916 = vpack.c.b16 %v1394, %v1388
        %v1917 = vpack.c.b16 %v1395, %v1389
        %v1918 = vpack.c.b16 %v1396, %v1390
        %v1919 = vpack.c.b16 %v1397, %v1391
        %v1920 = vpack.c.b16 %v1398, %v1392
        %v1921 = vpack.c.b16 %v1405, %v1399
        %v1922 = vpack.c.b16 %v1406, %v1400
        %v1923 = vpack.c.b16 %v1407, %v1401
        %v1924 = vpack.c.b16 %v1408, %v1402
        %v1925 = vpack.c.b16 %v1409, %v1403
        %v1926 = vpack.c.b16 %v1410, %v1404
        %v1927 = vpack.c.b16 %v1417, %v1411
        %v1928 = vpack.c.b16 %v1418, %v1412
        %v1929 = vpack.c.b16 %v1419, %v1413
        %v1930 = vpack.c.b16 %v1420, %v1414
        %v1931 = vpack.c.b16 %v1421, %v1415
        %v1932 = vpack.c.b16 %v1422, %v1416
        %v1933 = vpack.c.b16 %v1429, %v1423
        %v1934 = vpack.c.b16 %v1430, %v1424
        %v1935 = vpack.c.b16 %v1431, %v1425
        %v1936 = vpack.c.b16 %v1432, %v1426
        %v1937 = vpack.c.b16 %v1433, %v1427
        %v1938 = vpack.c.b16 %v1434, %v1428
        %v1939 = vpack.c.b16 %v1441, %v1435
        %v1940 = vpack.c.b16 %v1442, %v1436
        %v1941 = vpack.c.b16 %v1443, %v1437
        %v1942 = vpack.c.b16 %v1444, %v1438
        %v1943 = vpack.c.b16 %v1445, %v1439
        %v1944 = vpack.c.b16 %v1446, %v1440
        %v1945 = vpack.c.b16 %v1453, %v1447
        %v1946 = vpack.c.b16 %v1454, %v1448
        %v1947 = vpack.c.b16 %v1455, %v1449
        %v1948 = vpack.c.b16 %v1456, %v1450
        %v1949 = vpack.c.b16 %v1457, %v1451
        %v1950 = vpack.c.b16 %v1458, %v1452
        %v1951 = vpack.c.b16 %v1465, %v1459
        %v1952 = vpack.c.b16 %v1466, %v1460
        %v1953 = vpack.c.b16 %v1467, %v1461
        %v1954 = vpack.c.b16 %v1468, %v1462
        %v1955 = vpack.c.b16 %v1469, %v1463
        %v1956 = vpack.c.b16 %v1470, %v1464
        %v1957 = vpack.c.b16 %v1477, %v1471
        %v1958 = vpack.c.b16 %v1478, %v1472
        %v1959 = vpack.c.b16 %v1479, %v1473
        %v1960 = vpack.c.b16 %v1480, %v1474
        %v1961 = vpack.c.b16 %v1481, %v1475
        %v1962 = vpack.c.b16 %v1482, %v1476
        %v1963 = vpack.c.b16 %v1489, %v1483
        %v1964 = vpack.c.b16 %v1490, %v1484
        %v1965 = vpack.c.b16 %v1491, %v1485
        %v1966 = vpack.c.b16 %v1492, %v1486
        %v1967 = vpack.c.b16 %v1493, %v1487
        %v1968 = vpack.c.b16 %v1494, %v1488
        %v1969 = vpack.c.b16 %v1501, %v1495
        %v1970 = vpack.c.b16 %v1502, %v1496
        %v1971 = vpack.c.b16 %v1503, %v1497
        %v1972 = vpack.c.b16 %v1504, %v1498
        %v1973 = vpack.c.b16 %v1505, %v1499
        %v1974 = vpack.c.b16 %v1506, %v1500
        %v1975 = vpack.c.b16 %v1513, %v1507
        %v1976 = vpack.c.b16 %v1514, %v1508
        %v1977 = vpack.c.b16 %v1515, %v1509
        %v1978 = vpack.c.b16 %v1516, %v1510
        %v1979 = vpack.c.b16 %v1517, %v1511
        %v1980 = vpack.c.b16 %v1518, %v1512
        %v1981 = vpack.c.b16 %v1525, %v1519
        %v1982 = vpack.c.b16 %v1526, %v1520
        %v1983 = vpack.c.b16 %v1527, %v1521
        %v1984 = vpack.c.b16 %v1528, %v1522
        %v1985 = vpack.c.b16 %v1529, %v1523
        %v1986 = vpack.c.b16 %v1530, %v1524
        %v1987 = vpack.c.b16 %v1537, %v1531
        %v1988 = vpack.c.b16 %v1538, %v1532
        %v1989 = vpack.c.b16 %v1539, %v1533
        %v1990 = vpack.c.b16 %v1540, %v1534
        %v1991 = vpack.c.b16 %v1541, %v1535
        %v1992 = vpack.c.b16 %v1542, %v1536
        %v1993 = vpack.c.b16 %v1549, %v1543
        %v1994 = vpack.c.b16 %v1550, %v1544
        %v1995 = vpack.c.b16 %v1551, %v1545
        %v1996 = vpack.c.b16 %v1552, %v1546
        %v1997 = vpack.c.b16 %v1553, %v1547
        %v1998 = vpack.c.b16 %v1554, %v1548
        %v1999 = vpack.c.b16 %v1561, %v1555
        %v2000 = vpack.c.b16 %v1562, %v1556
        %v2001 = vpack.c.b16 %v1563, %v1557
        %v2002 = vpack.c.b16 %v1564, %v1558
        %v2003 = vpack.c.b16 %v1565, %v1559
        %v2004 = vpack.c.b16 %v1566, %v1560
        %v2005 = vpack.c.b16 %v1573, %v1567
        %v2006 = vpack.c.b16 %v1574, %v1568
        %v2007 = vpack.c.b16 %v1575, %v1569
        %v2008 = vpack.c.b16 %v1576, %v1570
        %v2009 = vpack.c.b16 %v1577, %v1571
        %v2010 = vpack.c.b16 %v1578, %v1572
        %v2011 = vpack.c.b16 %v1585, %v1579
        %v2012 = vpack.c.b16 %v1586, %v1580
        %v2013 = vpack.c.b16 %v1587, %v1581
        %v2014 = vpack.c.b16 %v1588, %v1582
        %v2015 = vpack.c.b16 %v1589, %v1583
        %v2016 = vpack.c.b16 %v1590, %v1584
        %v2017 = vpack.c.b16 %v1597, %v1591
        %v2018 = vpack.c.b16 %v1598, %v1592
        %v2019 = vpack.c.b16 %v1599, %v1593
        %v2020 = vpack.c.b16 %v1600, %v1594
        %v2021 = vpack.c.b16 %v1601, %v1595
        %v2022 = vpack.c.b16 %v1602, %v1596
        %v2023 = vpack.c.b16 %v1609, %v1603
        %v2024 = vpack.c.b16 %v1610, %v1604
        %v2025 = vpack.c.b16 %v1611, %v1605
        %v2026 = vpack.c.b16 %v1612, %v1606
        %v2027 = vpack.c.b16 %v1613, %v1607
        %v2028 = vpack.c.b16 %v1614, %v1608
        %v2029 = vpack.c.b16 %v1621, %v1615
        %v2030 = vpack.c.b16 %v1622, %v1616
        %v2031 = vpack.c.b16 %v1623, %v1617
        %v2032 = vpack.c.b16 %v1624, %v1618
        %v2033 = vpack.c.b16 %v1625, %v1619
        %v2034 = vpack.c.b16 %v1626, %v1620
        %v2035 = vpack.c.b16 %v1633, %v1627
        %v2036 = vpack.c.b16 %v1634, %v1628
        %v2037 = vpack.c.b16 %v1635, %v1629
        %v2038 = vpack.c.b16 %v1636, %v1630
        %v2039 = vpack.c.b16 %v1637, %v1631
        %v2040 = vpack.c.b16 %v1638, %v1632
        %v2041 = vpack.c.b16 %v1645, %v1639
        %v2042 = vpack.c.b16 %v1646, %v1640
        %v2043 = vpack.c.b16 %v1647, %v1641
        %v2044 = vpack.c.b16 %v1648, %v1642
        %v2045 = vpack.c.b16 %v1649, %v1643
        %v2046 = vpack.c.b16 %v1650, %v1644
        %v2047 = vpack.c.b16 %v1657, %v1651
        %v2048 = vpack.c.b16 %v1658, %v1652
        %v2049 = vpack.c.b16 %v1659, %v1653
        %v2050 = vpack.c.b16 %v1660, %v1654
        %v2051 = vpack.c.b16 %v1661, %v1655
        %v2052 = vpack.c.b16 %v1662, %v1656
        %v2053 = vpack.c.b16 %v1669, %v1663
        %v2054 = vpack.c.b16 %v1670, %v1664
        %v2055 = vpack.c.b16 %v1671, %v1665
        %v2056 = vpack.c.b16 %v1672, %v1666
        %v2057 = vpack.c.b16 %v1673, %v1667
        %v2058 = vpack.c.b16 %v1674, %v1668
        %v2059 = vpack.c.b16 %v1681, %v1675
        %v2060 = vpack.c.b16 %v1682, %v1676
        %v2061 = vpack.c.b16 %v1683, %v1677
        %v2062 = vpack.c.b16 %v1684, %v1678
        %v2063 = vpack.c.b16 %v1685, %v1679
        %v2064 = vpack.c.b16 %v1686, %v1680
        %v2065 = vpack.c.b16 %v1693, %v1687
        %v2066 = vpack.c.b16 %v1694, %v1688
        %v2067 = vpack.c.b16 %v1695, %v1689
        %v2068 = vpack.c.b16 %v1696, %v1690
        %v2069 = vpack.c.b16 %v1697, %v1691
        %v2070 = vpack.c.b16 %v1698, %v1692
        %v2071 = vpack.c.b16 %v1705, %v1699
        %v2072 = vpack.c.b16 %v1706, %v1700
        %v2073 = vpack.c.b16 %v1707, %v1701
        %v2074 = vpack.c.b16 %v1708, %v1702
        %v2075 = vpack.c.b16 %v1709, %v1703
        %v2076 = vpack.c.b16 %v1710, %v1704
        %v2077 = vpack.c.b16 %v1717, %v1711
        %v2078 = vpack.c.b16 %v1718, %v1712
        %v2079 = vpack.c.b16 %v1719, %v1713
        %v2080 = vpack.c.b16 %v1720, %v1714
        %v2081 = vpack.c.b16 %v1721, %v1715
        %v2082 = vpack.c.b16 %v1722, %v1716
        %v2083 = vpack.c.b16 %v1729, %v1723
        %v2084 = vpack.c.b16 %v1730, %v1724
        %v2085 = vpack.c.b16 %v1731, %v1725
        %v2086 = vpack.c.b16 %v1732, %v1726
        %v2087 = vpack.c.b16 %v1733, %v1727
        %v2088 = vpack.c.b16 %v1734, %v1728
        %v2089 = vpack.c.b16 %v1741, %v1735
        %v2090 = vpack.c.b16 %v1742, %v1736
        %v2091 = vpack.c.b16 %v1743, %v1737
        %v2092 = vpack.c.b16 %v1744, %v1738
        %v2093 = vpack.c.b16 %v1745, %v1739
        %v2094 = vpack.c.b16 %v1746, %v1740
        %v2095 = vpack.c.b16 %v1753, %v1747
        %v2096 = vpack.c.b16 %v1754, %v1748
        %v2097 = vpack.c.b16 %v1755, %v1749
        %v2098 = vpack.c.b16 %v1756, %v1750
        %v2099 = vpack.c.b16 %v1757, %v1751
        %v2100 = vpack.c.b16 %v1758, %v1752
        %v2101 = vpack.c.b16 %v1765, %v1759
        %v2102 = vpack.c.b16 %v1766, %v1760
        %v2103 = vpack.c.b16 %v1767, %v1761
        %v2104 = vpack.c.b16 %v1768, %v1762
        %v2105 = vpack.c.b16 %v1769, %v1763
        %v2106 = vpack.c.b16 %v1770, %v1764
        %v2107 = vpack.c.b16 %v1777, %v1771
        %v2108 = vpack.c.b16 %v1778, %v1772
        %v2109 = vpack.c.b16 %v1779, %v1773
        %v2110 = vpack.c.b16 %v1780, %v1774
        %v2111 = vpack.c.b16 %v1781, %v1775
        %v2112 = vpack.c.b16 %v1782, %v1776
        %v2113 = vpack.c.b16 %v1789, %v1783
        %v2114 = vpack.c.b16 %v1790, %v1784
        %v2115 = vpack.c.b16 %v1791, %v1785
        %v2116 = vpack.c.b16 %v1792, %v1786
        %v2117 = vpack.c.b16 %v1793, %v1787
        %v2118 = vpack.c.b16 %v1794, %v1788
        %v2119 = vpack.c.b16 %v1801, %v1795
        %v2120 = vpack.c.b16 %v1802, %v1796
        %v2121 = vpack.c.b16 %v1803, %v1797
        %v2122 = vpack.c.b16 %v1804, %v1798
        %v2123 = vpack.c.b16 %v1805, %v1799
        %v2124 = vpack.c.b16 %v1806, %v1800
        %v2125 = vpack.c.b16 %v1813, %v1807
        %v2126 = vpack.c.b16 %v1814, %v1808
        %v2127 = vpack.c.b16 %v1815, %v1809
        %v2128 = vpack.c.b16 %v1816, %v1810
        %v2129 = vpack.c.b16 %v1817, %v1811
        %v2130 = vpack.c.b16 %v1818, %v1812
        %v2131 = vpack.c.b16 %v1825, %v1819
        %v2132 = vpack.c.b16 %v1826, %v1820
        %v2133 = vpack.c.b16 %v1827, %v1821
        %v2134 = vpack.c.b16 %v1828, %v1822
        %v2135 = vpack.c.b16 %v1829, %v1823
        %v2136 = vpack.c.b16 %v1830, %v1824
        %v2137 = vpack.c.b16 %v1837, %v1831
        %v2138 = vpack.c.b16 %v1838, %v1832
        %v2139 = vpack.c.b16 %v1839, %v1833
        %v2140 = vpack.c.b16 %v1840, %v1834
        %v2141 = vpack.c.b16 %v1841, %v1835
        %v2142 = vpack.c.b16 %v1842, %v1836
        %v2143 = vpack.c.b16 %v1849, %v1843
        %v2144 = vpack.c.b16 %v1850, %v1844
        %v2145 = vpack.c.b16 %v1851, %v1845
        %v2146 = vpack.c.b16 %v1852, %v1846
        %v2147 = vpack.c.b16 %v1853, %v1847
        %v2148 = vpack.c.b16 %v1854, %v1848
        %v2149 = vpack.c.b16 %v1861, %v1855
        %v2150 = vpack.c.b16 %v1862, %v1856
        %v2151 = vpack.c.b16 %v1863, %v1857
        %v2152 = vpack.c.b16 %v1864, %v1858
        %v2153 = vpack.c.b16 %v1865, %v1859
        %v2154 = vpack.c.b16 %v1866, %v1860
        %2443 = vmatprep.subr.bf16.mxu0 %v1868
        %2444 = vmatpush1.bf16.msra.mxu0 %v1867
        %2445 = vmatprep.subr.bf16.mxu0 %v1874
        %2446 = vmatpush1.bf16.msra.mxu0 %v1873
        %2447 = vmatprep.subr.bf16.mxu0 %v1880
        %2448 = vmatpush1.bf16.msra.mxu0 %v1879
        %2449 = vmatprep.subr.bf16.mxu0 %v1886
        %2450 = vmatpush1.bf16.msra.mxu0 %v1885
        %2451 = vmatprep.subr.bf16.mxu0 %v1892
        %2452 = vmatpush1.bf16.msra.mxu0 %v1891
        %2453 = vmatprep.subr.bf16.mxu0 %v1898
        %2454 = vmatpush1.bf16.msra.mxu0 %v1897
        %2455 = vmatprep.subr.bf16.mxu0 %v1904
        %2456 = vmatpush1.bf16.msra.mxu0 %v1903
        %2457 = vmatprep.subr.bf16.mxu0 %v1910
        %2458 = vmatpush1.bf16.msra.mxu0 %v1909
        %2459 = vmatprep.subr.bf16.mxu0 %v1916
        %2460 = vmatpush1.bf16.msra.mxu0 %v1915
        %2461 = vmatprep.subr.bf16.mxu0 %v1922
        %2462 = vmatpush1.bf16.msra.mxu0 %v1921
        %2463 = vmatprep.subr.bf16.mxu0 %v1928
        %2464 = vmatpush1.bf16.msra.mxu0 %v1927
        %2465 = vmatprep.subr.bf16.mxu0 %v1934
        %2466 = vmatpush1.bf16.msra.mxu0 %v1933
        %2467 = vmatprep.subr.bf16.mxu0 %v1940
        %2468 = vmatpush1.bf16.msra.mxu0 %v1939
        %2469 = vmatprep.subr.bf16.mxu0 %v1946
        %2470 = vmatpush1.bf16.msra.mxu0 %v1945
        %2471 = vmatprep.subr.bf16.mxu0 %v1952
        %2472 = vmatpush1.bf16.msra.mxu0 %v1951
        %2473 = vmatprep.subr.bf16.mxu0 %v1958
        %2474 = vmatpush1.bf16.msra.mxu0 %v1957
        %2475 = vmatprep.mubr.bf16.mxu0 %v708
        %2476 = vmatmul.mubr.bf16.gmra.mrb[0].mxu0 %v707
        %v2477 = vpop.f32.mrb[0].mxu0
        %v2478 = vadd.f32 %v1002, %v2477
        %v2479 = vpop.f32.mrb[0].mxu0
        %v2480 = vadd.f32 %v1002, %v2479
        %v2481 = vpop.f32.mrb[0].mxu0
        %v2482 = vpop.f32.mrb[0].mxu0
        %2483 = vdwg.mxu0
        %2484 = vmatprep.subr.bf16.mxu0 %v1964
        %2485 = vmatpush1.bf16.msra.mxu0 %v1963
        %2486 = vmatprep.subr.bf16.mxu0 %v1970
        %2487 = vmatpush1.bf16.msra.mxu0 %v1969
        %2488 = vmatprep.subr.bf16.mxu0 %v1976
        %2489 = vmatpush1.bf16.msra.mxu0 %v1975
        %2490 = vmatprep.subr.bf16.mxu0 %v1982
        %2491 = vmatpush1.bf16.msra.mxu0 %v1981
        %2492 = vmatprep.subr.bf16.mxu0 %v1988
        %2493 = vmatpush1.bf16.msra.mxu0 %v1987
        %2494 = vmatprep.subr.bf16.mxu0 %v1994
        %2495 = vmatpush1.bf16.msra.mxu0 %v1993
        %2496 = vmatprep.subr.bf16.mxu0 %v2000
        %2497 = vmatpush1.bf16.msra.mxu0 %v1999
        %2498 = vmatprep.subr.bf16.mxu0 %v2006
        %2499 = vmatpush1.bf16.msra.mxu0 %v2005
        %2500 = vmatprep.subr.bf16.mxu0 %v2012
        %2501 = vmatpush1.bf16.msra.mxu0 %v2011
        %2502 = vmatprep.subr.bf16.mxu0 %v2018
        %2503 = vmatpush1.bf16.msra.mxu0 %v2017
        %2504 = vmatprep.subr.bf16.mxu0 %v2024
        %2505 = vmatpush1.bf16.msra.mxu0 %v2023
        %2506 = vmatprep.subr.bf16.mxu0 %v2030
        %2507 = vmatpush1.bf16.msra.mxu0 %v2029
        %2508 = vmatprep.subr.bf16.mxu0 %v2036
        %2509 = vmatpush1.bf16.msra.mxu0 %v2035
        %2510 = vmatprep.subr.bf16.mxu0 %v2042
        %2511 = vmatpush1.bf16.msra.mxu0 %v2041
        %2512 = vmatprep.subr.bf16.mxu0 %v2048
        %2513 = vmatpush1.bf16.msra.mxu0 %v2047
        %2514 = vmatprep.subr.bf16.mxu0 %v2054
        %2515 = vmatpush1.bf16.msra.mxu0 %v2053
        %2516 = vmatprep.mubr.bf16.mxu0 %v710
        %2517 = vmatmul.mubr.bf16.gmra.mrb[0].mxu0 %v709
        %v2518 = vpop.f32.mrb[0].mxu0
        %v2519 = vadd.f32 %v2478, %v2518
        %v2520 = vpop.f32.mrb[0].mxu0
        %v2521 = vadd.f32 %v2480, %v2520
        %v2522 = vpop.f32.mrb[0].mxu0
        %v2523 = vpop.f32.mrb[0].mxu0
        %2524 = vdwg.mxu0
        %2525 = vmatprep.subr.bf16.mxu0 %v2060
        %2526 = vmatpush1.bf16.msra.mxu0 %v2059
        %2527 = vmatprep.subr.bf16.mxu0 %v2066
        %2528 = vmatpush1.bf16.msra.mxu0 %v2065
        %2529 = vmatprep.subr.bf16.mxu0 %v2072
        %2530 = vmatpush1.bf16.msra.mxu0 %v2071
        %2531 = vmatprep.subr.bf16.mxu0 %v2078
        %2532 = vmatpush1.bf16.msra.mxu0 %v2077
        %2533 = vmatprep.subr.bf16.mxu0 %v2084
        %2534 = vmatpush1.bf16.msra.mxu0 %v2083
        %2535 = vmatprep.subr.bf16.mxu0 %v2090
        %2536 = vmatpush1.bf16.msra.mxu0 %v2089
        %2537 = vmatprep.subr.bf16.mxu0 %v2096
        %2538 = vmatpush1.bf16.msra.mxu0 %v2095
        %2539 = vmatprep.subr.bf16.mxu0 %v2102
        %2540 = vmatpush1.bf16.msra.mxu0 %v2101
        %2541 = vmatprep.subr.bf16.mxu0 %v2108
        %2542 = vmatpush1.bf16.msra.mxu0 %v2107
        %2543 = vmatprep.subr.bf16.mxu0 %v2114
        %2544 = vmatpush1.bf16.msra.mxu0 %v2113
        %2545 = vmatprep.subr.bf16.mxu0 %v2120
        %2546 = vmatpush1.bf16.msra.mxu0 %v2119
        %2547 = vmatprep.subr.bf16.mxu0 %v2126
        %2548 = vmatpush1.bf16.msra.mxu0 %v2125
        %2549 = vmatprep.subr.bf16.mxu0 %v2132
        %2550 = vmatpush1.bf16.msra.mxu0 %v2131
        %2551 = vmatprep.subr.bf16.mxu0 %v2138
        %2552 = vmatpush1.bf16.msra.mxu0 %v2137
        %2553 = vmatprep.subr.bf16.mxu0 %v2144
        %2554 = vmatpush1.bf16.msra.mxu0 %v2143
        %2555 = vmatprep.subr.bf16.mxu0 %v2150
        %2556 = vmatpush1.bf16.msra.mxu0 %v2149
        %2557 = vmatprep.mubr.bf16.mxu0 %v712
        %2558 = vmatmul.mubr.bf16.gmra.mrb[0].mxu0 %v711
        %v2559 = vpop.f32.mrb[0].mxu0
        %v2560 = vadd.f32 %v2519, %v2559
        %v2561 = vpop.f32.mrb[0].mxu0
        %v2562 = vadd.f32 %v2521, %v2561
        %v2563 = vpop.f32.mrb[0].mxu0
        %v2564 = vpop.f32.mrb[0].mxu0
        %2565 = vdwg.mxu0
        %2566 = vmatprep.subr.bf16.mxu0 %v1870
        %2567 = vmatpush1.bf16.msra.mxu0 %v1869
        %2568 = vmatprep.subr.bf16.mxu0 %v1876
        %2569 = vmatpush1.bf16.msra.mxu0 %v1875
        %2570 = vmatprep.subr.bf16.mxu0 %v1882
        %2571 = vmatpush1.bf16.msra.mxu0 %v1881
        %2572 = vmatprep.subr.bf16.mxu0 %v1888
        %2573 = vmatpush1.bf16.msra.mxu0 %v1887
        %2574 = vmatprep.subr.bf16.mxu0 %v1894
        %2575 = vmatpush1.bf16.msra.mxu0 %v1893
        %2576 = vmatprep.subr.bf16.mxu0 %v1900
        %2577 = vmatpush1.bf16.msra.mxu0 %v1899
        %2578 = vmatprep.subr.bf16.mxu0 %v1906
        %2579 = vmatpush1.bf16.msra.mxu0 %v1905
        %2580 = vmatprep.subr.bf16.mxu0 %v1912
        %2581 = vmatpush1.bf16.msra.mxu0 %v1911
        %2582 = vmatprep.subr.bf16.mxu0 %v1918
        %2583 = vmatpush1.bf16.msra.mxu0 %v1917
        %2584 = vmatprep.subr.bf16.mxu0 %v1924
        %2585 = vmatpush1.bf16.msra.mxu0 %v1923
        %2586 = vmatprep.subr.bf16.mxu0 %v1930
        %2587 = vmatpush1.bf16.msra.mxu0 %v1929
        %2588 = vmatprep.subr.bf16.mxu0 %v1936
        %2589 = vmatpush1.bf16.msra.mxu0 %v1935
        %2590 = vmatprep.subr.bf16.mxu0 %v1942
        %2591 = vmatpush1.bf16.msra.mxu0 %v1941
        %2592 = vmatprep.subr.bf16.mxu0 %v1948
        %2593 = vmatpush1.bf16.msra.mxu0 %v1947
        %2594 = vmatprep.subr.bf16.mxu0 %v1954
        %2595 = vmatpush1.bf16.msra.mxu0 %v1953
        %2596 = vmatprep.subr.bf16.mxu0 %v1960
        %2597 = vmatpush1.bf16.msra.mxu0 %v1959
        %2598 = vmatprep.mubr.bf16.mxu0 %v708
        %2599 = vmatmul.mubr.bf16.gmra.mrb[0].mxu0 %v707
        %v2600 = vpop.f32.mrb[0].mxu0
        %v2601 = vadd.f32 %v1002, %v2600
        %v2602 = vpop.f32.mrb[0].mxu0
        %v2603 = vadd.f32 %v1002, %v2602
        %v2604 = vpop.f32.mrb[0].mxu0
        %v2605 = vpop.f32.mrb[0].mxu0
        %2606 = vdwg.mxu0
        %2607 = vmatprep.subr.bf16.mxu0 %v1966
        %2608 = vmatpush1.bf16.msra.mxu0 %v1965
        %2609 = vmatprep.subr.bf16.mxu0 %v1972
        %2610 = vmatpush1.bf16.msra.mxu0 %v1971
        %2611 = vmatprep.subr.bf16.mxu0 %v1978
        %2612 = vmatpush1.bf16.msra.mxu0 %v1977
        %2613 = vmatprep.subr.bf16.mxu0 %v1984
        %2614 = vmatpush1.bf16.msra.mxu0 %v1983
        %2615 = vmatprep.subr.bf16.mxu0 %v1990
        %2616 = vmatpush1.bf16.msra.mxu0 %v1989
        %2617 = vmatprep.subr.bf16.mxu0 %v1996
        %2618 = vmatpush1.bf16.msra.mxu0 %v1995
        %2619 = vmatprep.subr.bf16.mxu0 %v2002
        %2620 = vmatpush1.bf16.msra.mxu0 %v2001
        %2621 = vmatprep.subr.bf16.mxu0 %v2008
        %2622 = vmatpush1.bf16.msra.mxu0 %v2007
        %2623 = vmatprep.subr.bf16.mxu0 %v2014
        %2624 = vmatpush1.bf16.msra.mxu0 %v2013
        %2625 = vmatprep.subr.bf16.mxu0 %v2020
        %2626 = vmatpush1.bf16.msra.mxu0 %v2019
        %2627 = vmatprep.subr.bf16.mxu0 %v2026
        %2628 = vmatpush1.bf16.msra.mxu0 %v2025
        %2629 = vmatprep.subr.bf16.mxu0 %v2032
        %2630 = vmatpush1.bf16.msra.mxu0 %v2031
        %2631 = vmatprep.subr.bf16.mxu0 %v2038
        %2632 = vmatpush1.bf16.msra.mxu0 %v2037
        %2633 = vmatprep.subr.bf16.mxu0 %v2044
        %2634 = vmatpush1.bf16.msra.mxu0 %v2043
        %2635 = vmatprep.subr.bf16.mxu0 %v2050
        %2636 = vmatpush1.bf16.msra.mxu0 %v2049
        %2637 = vmatprep.subr.bf16.mxu0 %v2056
        %2638 = vmatpush1.bf16.msra.mxu0 %v2055
        %2639 = vmatprep.mubr.bf16.mxu0 %v710
        %2640 = vmatmul.mubr.bf16.gmra.mrb[0].mxu0 %v709
        %v2641 = vpop.f32.mrb[0].mxu0
        %v2642 = vadd.f32 %v2601, %v2641
        %v2643 = vpop.f32.mrb[0].mxu0
        %v2644 = vadd.f32 %v2603, %v2643
        %v2645 = vpop.f32.mrb[0].mxu0
        %v2646 = vpop.f32.mrb[0].mxu0
        %2647 = vdwg.mxu0
        %2648 = vmatprep.subr.bf16.mxu0 %v2062
        %2649 = vmatpush1.bf16.msra.mxu0 %v2061
        %2650 = vmatprep.subr.bf16.mxu0 %v2068
        %2651 = vmatpush1.bf16.msra.mxu0 %v2067
        %2652 = vmatprep.subr.bf16.mxu0 %v2074
        %2653 = vmatpush1.bf16.msra.mxu0 %v2073
        %2654 = vmatprep.subr.bf16.mxu0 %v2080
        %2655 = vmatpush1.bf16.msra.mxu0 %v2079
        %2656 = vmatprep.subr.bf16.mxu0 %v2086
        %2657 = vmatpush1.bf16.msra.mxu0 %v2085
        %2658 = vmatprep.subr.bf16.mxu0 %v2092
        %2659 = vmatpush1.bf16.msra.mxu0 %v2091
        %2660 = vmatprep.subr.bf16.mxu0 %v2098
        %2661 = vmatpush1.bf16.msra.mxu0 %v2097
        %2662 = vmatprep.subr.bf16.mxu0 %v2104
        %2663 = vmatpush1.bf16.msra.mxu0 %v2103
        %2664 = vmatprep.subr.bf16.mxu0 %v2110
        %2665 = vmatpush1.bf16.msra.mxu0 %v2109
        %2666 = vmatprep.subr.bf16.mxu0 %v2116
        %2667 = vmatpush1.bf16.msra.mxu0 %v2115
        %2668 = vmatprep.subr.bf16.mxu0 %v2122
        %2669 = vmatpush1.bf16.msra.mxu0 %v2121
        %2670 = vmatprep.subr.bf16.mxu0 %v2128
        %2671 = vmatpush1.bf16.msra.mxu0 %v2127
        %2672 = vmatprep.subr.bf16.mxu0 %v2134
        %2673 = vmatpush1.bf16.msra.mxu0 %v2133
        %2674 = vmatprep.subr.bf16.mxu0 %v2140
        %2675 = vmatpush1.bf16.msra.mxu0 %v2139
        %2676 = vmatprep.subr.bf16.mxu0 %v2146
        %2677 = vmatpush1.bf16.msra.mxu0 %v2145
        %2678 = vmatprep.subr.bf16.mxu0 %v2152
        %2679 = vmatpush1.bf16.msra.mxu0 %v2151
        %2680 = vmatprep.mubr.bf16.mxu0 %v712
        %2681 = vmatmul.mubr.bf16.gmra.mrb[0].mxu0 %v711
        %v2682 = vpop.f32.mrb[0].mxu0
        %v2683 = vadd.f32 %v2642, %v2682
        %v2684 = vpop.f32.mrb[0].mxu0
        %v2685 = vadd.f32 %v2644, %v2684
        %v2686 = vpop.f32.mrb[0].mxu0
        %v2687 = vpop.f32.mrb[0].mxu0
        %2688 = vdwg.mxu0
        %2689 = vmatprep.subr.bf16.mxu0 %v1872
        %2690 = vmatpush1.bf16.msra.mxu0 %v1871
        %2691 = vmatprep.subr.bf16.mxu0 %v1878
        %2692 = vmatpush1.bf16.msra.mxu0 %v1877
        %2693 = vmatprep.subr.bf16.mxu0 %v1884
        %2694 = vmatpush1.bf16.msra.mxu0 %v1883
        %2695 = vmatprep.subr.bf16.mxu0 %v1890
        %2696 = vmatpush1.bf16.msra.mxu0 %v1889
        %2697 = vmatprep.subr.bf16.mxu0 %v1896
        %2698 = vmatpush1.bf16.msra.mxu0 %v1895
        %2699 = vmatprep.subr.bf16.mxu0 %v1902
        %2700 = vmatpush1.bf16.msra.mxu0 %v1901
        %2701 = vmatprep.subr.bf16.mxu0 %v1908
        %2702 = vmatpush1.bf16.msra.mxu0 %v1907
        %2703 = vmatprep.subr.bf16.mxu0 %v1914
        %2704 = vmatpush1.bf16.msra.mxu0 %v1913
        %2705 = vmatprep.subr.bf16.mxu0 %v1920
        %2706 = vmatpush1.bf16.msra.mxu0 %v1919
        %2707 = vmatprep.subr.bf16.mxu0 %v1926
        %2708 = vmatpush1.bf16.msra.mxu0 %v1925
        %2709 = vmatprep.subr.bf16.mxu0 %v1932
        %2710 = vmatpush1.bf16.msra.mxu0 %v1931
        %2711 = vmatprep.subr.bf16.mxu0 %v1938
        %2712 = vmatpush1.bf16.msra.mxu0 %v1937
        %2713 = vmatprep.subr.bf16.mxu0 %v1944
        %2714 = vmatpush1.bf16.msra.mxu0 %v1943
        %2715 = vmatprep.subr.bf16.mxu0 %v1950
        %2716 = vmatpush1.bf16.msra.mxu0 %v1949
        %2717 = vmatprep.subr.bf16.mxu0 %v1956
        %2718 = vmatpush1.bf16.msra.mxu0 %v1955
        %2719 = vmatprep.subr.bf16.mxu0 %v1962
        %2720 = vmatpush1.bf16.msra.mxu0 %v1961
        %2721 = vmatprep.mubr.bf16.mxu0 %v708
        %2722 = vmatmul.mubr.bf16.gmra.mrb[0].mxu0 %v707
        %v2723 = vpop.f32.mrb[0].mxu0
        %v2724 = vadd.f32 %v1002, %v2723
        %v2725 = vpop.f32.mrb[0].mxu0
        %v2726 = vadd.f32 %v1002, %v2725
        %v2727 = vpop.f32.mrb[0].mxu0
        %v2728 = vpop.f32.mrb[0].mxu0
        %2729 = vdwg.mxu0
        %2730 = vmatprep.subr.bf16.mxu0 %v1968
        %2731 = vmatpush1.bf16.msra.mxu0 %v1967
        %2732 = vmatprep.subr.bf16.mxu0 %v1974
        %2733 = vmatpush1.bf16.msra.mxu0 %v1973
        %2734 = vmatprep.subr.bf16.mxu0 %v1980
        %2735 = vmatpush1.bf16.msra.mxu0 %v1979
        %2736 = vmatprep.subr.bf16.mxu0 %v1986
        %2737 = vmatpush1.bf16.msra.mxu0 %v1985
        %2738 = vmatprep.subr.bf16.mxu0 %v1992
        %2739 = vmatpush1.bf16.msra.mxu0 %v1991
        %2740 = vmatprep.subr.bf16.mxu0 %v1998
        %2741 = vmatpush1.bf16.msra.mxu0 %v1997
        %2742 = vmatprep.subr.bf16.mxu0 %v2004
        %2743 = vmatpush1.bf16.msra.mxu0 %v2003
        %2744 = vmatprep.subr.bf16.mxu0 %v2010
        %2745 = vmatpush1.bf16.msra.mxu0 %v2009
        %2746 = vmatprep.subr.bf16.mxu0 %v2016
        %2747 = vmatpush1.bf16.msra.mxu0 %v2015
        %2748 = vmatprep.subr.bf16.mxu0 %v2022
        %2749 = vmatpush1.bf16.msra.mxu0 %v2021
        %2750 = vmatprep.subr.bf16.mxu0 %v2028
        %2751 = vmatpush1.bf16.msra.mxu0 %v2027
        %2752 = vmatprep.subr.bf16.mxu0 %v2034
        %2753 = vmatpush1.bf16.msra.mxu0 %v2033
        %2754 = vmatprep.subr.bf16.mxu0 %v2040
        %2755 = vmatpush1.bf16.msra.mxu0 %v2039
        %2756 = vmatprep.subr.bf16.mxu0 %v2046
        %2757 = vmatpush1.bf16.msra.mxu0 %v2045
        %2758 = vmatprep.subr.bf16.mxu0 %v2052
        %2759 = vmatpush1.bf16.msra.mxu0 %v2051
        %2760 = vmatprep.subr.bf16.mxu0 %v2058
        %2761 = vmatpush1.bf16.msra.mxu0 %v2057
        %2762 = vmatprep.mubr.bf16.mxu0 %v710
        %2763 = vmatmul.mubr.bf16.gmra.mrb[0].mxu0 %v709
        %v2764 = vpop.f32.mrb[0].mxu0
        %v2765 = vadd.f32 %v2724, %v2764
        %v2766 = vpop.f32.mrb[0].mxu0
        %v2767 = vadd.f32 %v2726, %v2766
        %v2768 = vpop.f32.mrb[0].mxu0
        %v2769 = vpop.f32.mrb[0].mxu0
        %2770 = vdwg.mxu0
        %2771 = vmatprep.subr.bf16.mxu0 %v2064
        %2772 = vmatpush1.bf16.msra.mxu0 %v2063
        %2773 = vmatprep.subr.bf16.mxu0 %v2070
        %2774 = vmatpush1.bf16.msra.mxu0 %v2069
        %2775 = vmatprep.subr.bf16.mxu0 %v2076
        %2776 = vmatpush1.bf16.msra.mxu0 %v2075
        %2777 = vmatprep.subr.bf16.mxu0 %v2082
        %2778 = vmatpush1.bf16.msra.mxu0 %v2081
        %2779 = vmatprep.subr.bf16.mxu0 %v2088
        %2780 = vmatpush1.bf16.msra.mxu0 %v2087
        %2781 = vmatprep.subr.bf16.mxu0 %v2094
        %2782 = vmatpush1.bf16.msra.mxu0 %v2093
        %2783 = vmatprep.subr.bf16.mxu0 %v2100
        %2784 = vmatpush1.bf16.msra.mxu0 %v2099
        %2785 = vmatprep.subr.bf16.mxu0 %v2106
        %2786 = vmatpush1.bf16.msra.mxu0 %v2105
        %2787 = vmatprep.subr.bf16.mxu0 %v2112
        %2788 = vmatpush1.bf16.msra.mxu0 %v2111
        %2789 = vmatprep.subr.bf16.mxu0 %v2118
        %2790 = vmatpush1.bf16.msra.mxu0 %v2117
        %2791 = vmatprep.subr.bf16.mxu0 %v2124
        %2792 = vmatpush1.bf16.msra.mxu0 %v2123
        %2793 = vmatprep.subr.bf16.mxu0 %v2130
        %2794 = vmatpush1.bf16.msra.mxu0 %v2129
        %2795 = vmatprep.subr.bf16.mxu0 %v2136
        %2796 = vmatpush1.bf16.msra.mxu0 %v2135
        %2797 = vmatprep.subr.bf16.mxu0 %v2142
        %2798 = vmatpush1.bf16.msra.mxu0 %v2141
        %2799 = vmatprep.subr.bf16.mxu0 %v2148
        %2800 = vmatpush1.bf16.msra.mxu0 %v2147
        %2801 = vmatprep.subr.bf16.mxu0 %v2154
        %2802 = vmatpush1.bf16.msra.mxu0 %v2153
        %2803 = vmatprep.mubr.bf16.mxu0 %v712
        %2804 = vmatmul.mubr.bf16.gmra.mrb[0].mxu0 %v711
        %v2805 = vpop.f32.mrb[0].mxu0
        %v2806 = vadd.f32 %v2765, %v2805
        %v2807 = vpop.f32.mrb[0].mxu0
        %v2808 = vadd.f32 %v2767, %v2807
        %v2809 = vpop.f32.mrb[0].mxu0
        %v2810 = vpop.f32.mrb[0].mxu0
        %2811 = vdwg.mxu0
        %v2818 = vcombine.low %v2560, %v2562
        %v2819 = vcombine.low %v2683, %v2685
        %v2820 = vcombine.low %v2806, %v2808
        %v2822 = vunpack.c.l.s4 1966171168
        %v2823 = vunpack.c.0.s8 %v2822
        %v2824 = vlaneseq
        %v2825 = vshrl.u32 %v2824, 7
        %v2826 = vsub.s32 %v2823, %v2825
        %v2827 = vrot.slane %v2818, %v2826
        %v2829 = vunpack.c.l.s4 1966171168
        %v2830 = vunpack.c.0.s8 %v2829
        %v2831 = vlaneseq
        %v2832 = vshrl.u32 %v2831, 7
        %v2833 = vsub.s32 %v2830, %v2832
        %v2834 = vrot.slane %v2819, %v2833
        %v2836 = vunpack.c.l.s4 1966171168
        %v2837 = vunpack.c.0.s8 %v2836
        %v2838 = vlaneseq
        %v2839 = vshrl.u32 %v2838, 7
        %v2840 = vsub.s32 %v2837, %v2839
        %v2841 = vrot.slane %v2820, %v2840
        %v2842 = vcombine.low %v2827, %v2834
        %v2843 = vcombine.high %v2827, %v2834
        %v2844 = vcombine.high %v2841, %v2841
        %v2846 = vunpack.c.l.s4 1966171168
        %v2847 = vunpack.c.0.s8 %v2846
        %v2848 = vlaneseq
        %v2849 = vshrl.u32 %v2848, 7
        %v2850 = vsub.s32 %v2847, %v2849
        %v2851 = vrot.slane %v2842, %v2850
        %v2853 = vunpack.c.l.s4 1966171168
        %v2854 = vunpack.c.0.s8 %v2853
        %v2855 = vlaneseq
        %v2856 = vshrl.u32 %v2855, 7
        %v2857 = vsub.s32 %v2854, %v2856
        %v2858 = vrot.slane %v2843, %v2857
        %v2860 = vunpack.c.l.s4 1966171168
        %v2861 = vunpack.c.0.s8 %v2860
        %v2862 = vlaneseq
        %v2863 = vshrl.u32 %v2862, 7
        %v2864 = vsub.s32 %v2861, %v2863
        %v2865 = vrot.slane %v2841, %v2864
        %v2867 = vunpack.c.l.s4 1966171168
        %v2868 = vunpack.c.0.s8 %v2867
        %v2869 = vlaneseq
        %v2870 = vshrl.u32 %v2869, 7
        %v2871 = vsub.s32 %v2868, %v2870
        %v2872 = vrot.slane %v2844, %v2871
        %v2873 = vcombine.low %v2851, %v2865
        %v2874 = vcombine.low %v2858, %v2872
        %v2877 = vlaneseq
        %vm2878 = vcmp.ge.s32.totalorder %v2877, 0
        %vm2879 = vcmp.lt.s32.totalorder %v2877, 768
        %vm2880 = vmand %vm2878, %vm2879
        %2881 = vst.msk [vmem:[%s244] sm:$0x3f] %vm2880, %v2873
        %2882 = vst.msk [vmem:[%s244 + $0x6] sm:$0x3f] %vm2880, %v2874
        %s2883 = sand.u32 %s121, 1
        %s2884 = scalar_lea.sflag [#allocation6], %s2883
        %s2885 = sand.u32 %s121, 1
        %s2886 = smul.addr %s2885, 12
        %s2887 = scalar_lea.vmem [#allocation11], %s2886
        // Predicated region
        $region49: #{tpu_custom_call.1} parent=35 // pred_check
          %p2888 = pneg %p131
        $region50: #{tpu_custom_call.1} parent=35 // pred_check_branch
          %2890 = sbr.rel (%p2888) target = $region52
        $region51: #{tpu_custom_call.1} parent=35 // pred_region
          %s2891 = smul.u32 2, %s24
          %s2893 = ssub.s32 192, 192
          %2894 = vsyncadd %s2884, %s2893
          %s2895 = smul.addr %s2891, 6
          %s2896 = smul.addr %s2895, 16
          %s2897 = scalar_lea.hbm %s4, %s2896
          %s2898 = sshll.u32 %s2887, 4
          %s2899 = int_to_ptr.vmem [resolvable:$true] %s2898
          %2904 = dma.vmem_to_hbm [thread:$0]  %s2899, 192, %s2897, %s2884, 96, 96, 6
        $region52: #{tpu_custom_call.1} parent=35 // pred_fallthru
          _
      $region36: #{tpu_custom_call.1} parent=5 // pred_fallthru
        _
      %p2905 = scmp.le.s32.totalorder 2, %s19
      // Predicated region
      $region53: #{tpu_custom_call.1} parent=5 // pred_check
        %p2906 = pneg %p2905
      $region54: #{tpu_custom_call.1} parent=5 // pred_check_branch
        %2908 = sbr.rel (%p2906) target = $region56
      $region55: #{tpu_custom_call.1} parent=5 // pred_region
        %s2909 = ssub.s32 %s19, 2
        // Predicated region
        $region57: #{tpu_custom_call.1} parent=55 // pred_check
          %p2910 = pneg %p137
        $region58: #{tpu_custom_call.1} parent=55 // pred_check_branch
          %2912 = sbr.rel (%p2910) target = $region60
        $region59: #{tpu_custom_call.1} parent=55 // pred_region
          %s2913 = sand.u32 %s122, 1
          %s2914 = scalar_lea.sflag [#allocation6], %s2913
          %s2915 = sand.u32 %s122, 1
          %s2916 = smul.addr %s2915, 12
          %s2917 = scalar_lea.vmem [#allocation11], %s2916
          %2918 = dma.done %s2914, 192
        $region60: #{tpu_custom_call.1} parent=55 // pred_fallthru
          _
      $region56: #{tpu_custom_call.1} parent=5 // pred_fallthru
        _
    $region6: #{tpu_custom_call.1} parent=1 // loop_footer
      %s23 = sadd.s32 1, %s19
    $region7: #{tpu_custom_call.1} parent=1 // loop_footer_branch
      %18 = sbr.rel target = $region3
    $region8: #{tpu_custom_call.1} parent=1 // loop_exit
      _
    %2919 = vsyncpa [#allocation5], 1
    %s2920 = scalar_lea.sflag [#allocation5], 1
    %2921 = vsyncpa %s2920, 1
    %2922 = vsyncpa [#allocation10], 1
    %2923 = vsyncpa [#allocation6], 1
    %s2924 = scalar_lea.sflag [#allocation6], 1
    %2925 = vsyncpa %s2924, 1
    %2926 = vsyncpa [#allocation7], 1
    %s2927 = scalar_lea.sflag [#allocation7], 1
    %2928 = vsyncpa %s2927, 1

</llo_original>
